<compile_context>
chip_gen: v5e
topology: v5e:2x2
jax: 0.10.0
libtpu: 0.0.40
codegen_flags: <defaults>
</compile_context>

<pallas_src>
import functools

import jax
import jax.numpy as jnp
from jax.experimental import pallas as pl
from jax.experimental.pallas import tpu as pltpu


def _make_ann_kernel(num_layers: int, seq_len: int, hidden: int, batch: int):
    """Builds the fused encoder -> wavefront LSTM -> decoder kernel."""
    H, T, B, L = hidden, seq_len, batch, num_layers
    H4 = 4 * H

    def lstm_cell(gates, c_prev):
        # Gate layout is [i, f, o | g] (permuted host-side): sigmoid over the
        # first 3H lanes only, tanh over the last H lanes only.
        sg = jax.nn.sigmoid(gates[:, :3 * H])
        g_g = jnp.tanh(gates[:, 3 * H:])
        i_g = sg[:, 0 * H:1 * H]
        f_g = sg[:, 1 * H:2 * H]
        o_g = sg[:, 2 * H:3 * H]
        c_new = f_g * c_prev + i_g * g_g
        h_new = o_g * jnp.tanh(c_new)
        return h_new, c_new

    def kernel(*refs):
        # ---- unpack refs -------------------------------------------------
        (swl_ref, x_ref, enc_w_ref, enc_b_ref,
         wih0_ref, b0_ref, wpack_ref) = refs[:7]
        idx = 7
        b_refs = refs[idx:idx + (L - 1)]          # folded biases, layers 1..L-1
        idx += L - 1
        dec_w_ref, dec_b_ref = refs[idx], refs[idx + 1]
        out_ref = refs[idx + 2]
        hcat_ref = refs[idx + 3]                  # VMEM scratch (B, T*H) f32

        # ---- encoder: h_0 of layer 0 = sigmoid(Linear(swl)) ---------------
        # (B,1)*(1,H) broadcast outer product on the VPU, f32 end-to-end
        # (v5e has no bf16 vector units, so keep elementwise math in f32).
        h0_init = jax.nn.sigmoid(swl_ref[...] * enc_w_ref[...] + enc_b_ref[...])

        # h/c carried as register values (static unroll, T and L are small).
        h = [h0_init] + [jnp.zeros((B, H), jnp.float32) for _ in range(L - 1)]
        c = [jnp.zeros((B, H), jnp.float32) for _ in range(L)]

        # ---- hoisted layer-0 input projection ------------------------------
        # (T*B, I) @ (I, 4H) bf16 MXU matmul, f32 accumulation; folded bias
        # (b_ih + b_hh) added here.  Per-timestep slabs are (8,128) tiles.
        xg_all = jnp.dot(x_ref[...], wih0_ref[...],
                         preferred_element_type=jnp.float32) + b0_ref[...]

        # ---- wavefront LSTM recurrence -------------------------------------
        # At wave s, layer l processes timestep t = s - l.  All L per-layer
        # matmuls of a wave are packed into ONE bf16 MXU matmul
        #   [h_0, ..., h_{L-1}] (B, L*H) @ W_pack (L*H, L*4H)
        # whose block-columns are [Whh_0 | W_ih_l ; W_hh_l], zero-padded.
        # Unused blocks (inactive layers at edge waves) are free filler.
        for s in range(T + L - 1):               # static unroll (T+L-1 == 9)
            # 2-way lane concat of 32-lane slabs -> lane selects, not copies.
            xh = jnp.concatenate(h, axis=-1).astype(jnp.bfloat16)
            big = jnp.dot(xh, wpack_ref[...],
                          preferred_element_type=jnp.float32)   # (B, L*4H)
            for l in range(L):
                t = s - l
                if 0 <= t < T:
                    gates = big[:, l * H4:(l + 1) * H4]
                    if l == 0:
                        gates = gates + xg_all[t * B:(t + 1) * B, :]
                    else:
                        gates = gates + b_refs[l - 1][...]
                    h[l], c[l] = lstm_cell(gates, c[l])
                    if l == L - 1:
                        # stage top-layer hidden at its lane offset; the store
                        # is off the serial recurrence chain.
                        hcat_ref[:, t * H:(t + 1) * H] = h[l]

        # ---- deferred decoder: one (B, T*H) @ (T*H, O) bf16 matmul ----------
        h_cat = hcat_ref[...].astype(jnp.bfloat16)
        out_ref[...] = jax.nn.sigmoid(
            jnp.dot(h_cat, dec_w_ref[...],
                    preferred_element_type=jnp.float32) + dec_b_ref[...])

    return kernel


def ann_forward(input_swl, inp, params, *, hidden_size, num_lstm_layers,
                output_size):
    """JAX/Pallas equivalent of ANN.forward.

    input_swl: (B, 1, 1) float32
    inp:       (B, T, I) float32 with T == output_size
    returns:   (B, output_size, 1) float32
    """
    B, T, I = inp.shape
    assert T == output_size, "reshape in forward() requires seq_len == output_size"
    H = hidden_size
    O = output_size
    L = num_lstm_layers

    # Pad batch to the 8-sublane tile: free on the MXU (M padded anyway),
    # removes sublane masking on every slice and on the output store.
    B_pad = max(8, ((B + 7) // 8) * 8)

    swl = input_swl.reshape(B, 1).astype(jnp.float32)            # squeeze(1)
    swl = jnp.pad(swl, ((0, B_pad - B), (0, 0)))
    x_pad = jnp.pad(inp.astype(jnp.float32),
                    ((0, B_pad - B), (0, 0), (0, 0)))
    # time-major then flatten: row t*B_pad + b holds inp[b, t, :]
    x_flat = jnp.transpose(x_pad, (1, 0, 2)).reshape(T * B_pad, I)
    x_flat = x_flat.astype(jnp.bfloat16)          # bf16 MXU operand

    operands = [swl, x_flat, params["enc_w"], params["enc_b"],
                params["wih_0"], params["b_0"], params["wpack"]]
    for l in range(1, L):
        operands.append(params[f"b_{l}"])
    operands += [params["dec_w"], params["dec_b"]]

    vmem_spec = pl.BlockSpec(memory_space=pltpu.MemorySpace.VMEM)
    kernel = _make_ann_kernel(L, T, H, B_pad)

    # TODO(synk): if deployment batch grows beyond a few rows, add a 1-D
    # "parallel" grid over batch (dimension_semantics=("parallel",)) so v7x's
    # two TensorCores split it; at B=2 (padded to 8) one program is optimal.
    out = pl.pallas_call(
        kernel,
        out_shape=jax.ShapeDtypeStruct((B_pad, O), jnp.float32),
        in_specs=[vmem_spec] * len(operands),
        out_specs=vmem_spec,
        scratch_shapes=[pltpu.VMEM((B_pad, T * H), jnp.float32)],
    )(*operands)

    # PyTorch: (B, 1, O) -> permute(0, 2, 1) -> (B, O, 1)
    return out[:B].reshape(B, O, 1)


def _reorder_gates(w):
    """Permute the last (4H) dim from torch order [i, f, g, o] to [i, f, o, g]."""
    H = w.shape[-1] // 4
    i, f, g, o = (w[..., 0:H], w[..., H:2 * H],
                  w[..., 2 * H:3 * H], w[..., 3 * H:4 * H])
    return jnp.concatenate([i, f, o, g], axis=-1)


def init_params(key, *, input_size, hidden_size, num_lstm_layers, output_size):
    """Deterministic init matching the torch module's shapes, converted to the
    kernel-ready layouts (transposed / gate-reordered / bias-folded / packed /
    bf16-cast) host-side."""
    H, I, O, L = hidden_size, input_size, output_size, num_lstm_layers
    T = output_size
    H4 = 4 * H
    keys = jax.random.split(key, 4 + 4 * L)
    k = iter(keys)

    params = {}
    # encoder Linear(1, H): torch weight (H, 1), bias (H,) ~ N(0, 1)
    enc_w = jax.random.normal(next(k), (H, 1), jnp.float32) * 0.1
    params["enc_w"] = enc_w.T                                    # (1, H) f32
    params["enc_b"] = jax.random.normal(next(k), (1, H), jnp.float32)

    # LSTM weights (torch: (4H, in), (4H, H), (4H,), (4H,)) -> wavefront pack.
    wpack = jnp.zeros((L * H, L * H4), jnp.float32)
    for l in range(L):
        in_dim = I if l == 0 else H
        wih = jax.random.normal(next(k), (H4, in_dim), jnp.float32) * 0.1
        whh = jax.random.normal(next(k), (H4, H), jnp.float32) * 0.1
        bih = jax.random.normal(next(k), (1, H4), jnp.float32) * 0.1
        bhh = jax.random.normal(next(k), (1, H4), jnp.float32) * 0.1
        wih_t = _reorder_gates(wih.T)            # (in_dim, 4H), [i,f,o,g]
        whh_t = _reorder_gates(whh.T)            # (H, 4H),      [i,f,o,g]
        b_folded = _reorder_gates(bih + bhh)     # (1, 4H)
        cols = slice(l * H4, (l + 1) * H4)
        if l == 0:
            params["wih_0"] = wih_t.astype(jnp.bfloat16)   # hoisted x-proj
            params["b_0"] = b_folded                       # f32
            wpack = wpack.at[0:H, cols].set(whh_t)         # [Whh_0; 0]
        else:
            params[f"b_{l}"] = b_folded                    # f32
            wpack = wpack.at[(l - 1) * H:l * H, cols].set(wih_t)
            wpack = wpack.at[l * H:(l + 1) * H, cols].set(whh_t)
    params["wpack"] = wpack.astype(jnp.bfloat16)           # (L*H, L*4H)

    # decoder Linear(H*T, O): torch weight (O, H*T), bias (O,) ~ N(0, 1)
    dec_w = jax.random.normal(next(k), (O, H * T), jnp.float32) * 0.1
    params["dec_w"] = dec_w.T.astype(jnp.bfloat16)         # (T*H, O)
    params["dec_b"] = jax.random.normal(next(k), (1, O), jnp.float32)
    return params


if __name__ == "__main__":
    # cfg: input_size=4, hidden_size=32, num_lstm_layers=2, output_size=8
    B, I, H, L, O = 2, 4, 32, 2, 8
    T = O  # forward's reshape requires seq_len == output_size

    key = jax.random.PRNGKey(0)
    k_swl, k_in, k_p = jax.random.split(key, 3)

    input_swl = jax.random.normal(k_swl, (B, 1, 1), jnp.float32)
    inp = jax.random.normal(k_in, (B, T, I), jnp.float32)
    params = init_params(k_p, input_size=I, hidden_size=H,
                         num_lstm_layers=L, output_size=O)

    fwd = functools.partial(ann_forward, hidden_size=H,
                            num_lstm_layers=L, output_size=O)
    out = jax.jit(lambda a, b: fwd(a, b, params))(input_swl, inp)
    jax.block_until_ready(out)
    assert out.shape == (B, O, 1)
    assert bool(jnp.all(jnp.isfinite(out)))
    print("KERNEL_OK")
</pallas_src>

<mosaic_0001>
module attributes {stable_mosaic.version = 11 : i64} {
  func.func @kernel(%arg0: memref<8x1xf32, #tpu.memory_space<vmem>>, %arg1: memref<64x4xbf16, #tpu.memory_space<vmem>>, %arg2: memref<1x32xf32, #tpu.memory_space<vmem>>, %arg3: memref<1x32xf32, #tpu.memory_space<vmem>>, %arg4: memref<4x128xbf16, #tpu.memory_space<vmem>>, %arg5: memref<1x128xf32, #tpu.memory_space<vmem>>, %arg6: memref<64x256xbf16, #tpu.memory_space<vmem>>, %arg7: memref<1x128xf32, #tpu.memory_space<vmem>>, %arg8: memref<256x8xbf16, #tpu.memory_space<vmem>>, %arg9: memref<1x8xf32, #tpu.memory_space<vmem>>, %arg10: memref<8x8xf32, #tpu.memory_space<vmem>>, %arg11: memref<8x256xf32, #tpu.memory_space<vmem>>) attributes {dimension_semantics = [], scalar_prefetch = 0 : i64, scratch_operands = 1 : i64, tpu.core_type = #tpu.core_type<tc>} {
    %c0 = arith.constant 0 : index
    %c0_0 = arith.constant 0 : index
    %0 = vector.load %arg0[%c0, %c0_0] : memref<8x1xf32, #tpu.memory_space<vmem>>, vector<8x1xf32>
    %c0_1 = arith.constant 0 : index
    %c0_2 = arith.constant 0 : index
    %1 = vector.load %arg2[%c0_1, %c0_2] : memref<1x32xf32, #tpu.memory_space<vmem>>, vector<1x32xf32>
    %2 = vector.broadcast %0 : vector<8x1xf32> to vector<8x32xf32>
    %3 = vector.broadcast %1 : vector<1x32xf32> to vector<8x32xf32>
    %4 = arith.mulf %2, %3 : vector<8x32xf32>
    %c0_3 = arith.constant 0 : index
    %c0_4 = arith.constant 0 : index
    %5 = vector.load %arg3[%c0_3, %c0_4] : memref<1x32xf32, #tpu.memory_space<vmem>>, vector<1x32xf32>
    %6 = vector.broadcast %5 : vector<1x32xf32> to vector<8x32xf32>
    %7 = arith.addf %4, %6 : vector<8x32xf32>
    %8 = arith.negf %7 : vector<8x32xf32>
    %9 = math.exp %8 : vector<8x32xf32>
    %cst = arith.constant 1.000000e+00 : f32
    %10 = vector.broadcast %cst : f32 to vector<8x32xf32>
    %11 = arith.addf %10, %9 : vector<8x32xf32>
    %12 = arith.divf %10, %11 : vector<8x32xf32>
    %cst_5 = arith.constant 0.000000e+00 : f32
    %13 = vector.broadcast %cst_5 : f32 to vector<8x32xf32>
    %cst_6 = arith.constant 0.000000e+00 : f32
    %14 = vector.broadcast %cst_6 : f32 to vector<8x32xf32>
    %cst_7 = arith.constant 0.000000e+00 : f32
    %15 = vector.broadcast %cst_7 : f32 to vector<8x32xf32>
    %c0_8 = arith.constant 0 : index
    %c0_9 = arith.constant 0 : index
    %16 = vector.load %arg1[%c0_8, %c0_9] : memref<64x4xbf16, #tpu.memory_space<vmem>>, vector<64x4xbf16>
    %c0_10 = arith.constant 0 : index
    %c0_11 = arith.constant 0 : index
    %17 = vector.load %arg4[%c0_10, %c0_11] : memref<4x128xbf16, #tpu.memory_space<vmem>>, vector<4x128xbf16>
    %cst_12 = arith.constant dense<0.000000e+00> : vector<64x128xf32>
    %18 = tpu.matmul %16, %17, %cst_12 {dimension_numbers = #tpu.dot_dimension_numbers<[1], [0], [0], [1], [0, 0, 1, 1], [], []>} : vector<64x4xbf16>, vector<4x128xbf16>, vector<64x128xf32> -> vector<64x128xf32>
    %c0_13 = arith.constant 0 : index
    %c0_14 = arith.constant 0 : index
    %19 = vector.load %arg5[%c0_13, %c0_14] : memref<1x128xf32, #tpu.memory_space<vmem>>, vector<1x128xf32>
    %20 = vector.broadcast %19 : vector<1x128xf32> to vector<64x128xf32>
    %21 = arith.addf %18, %20 : vector<64x128xf32>
    %22 = tpu.concatenate %12, %13 in 1 : vector<8x32xf32>, vector<8x32xf32> -> vector<8x64xf32>
    %23 = arith.truncf %22 : vector<8x64xf32> to vector<8x64xbf16>
    %c0_15 = arith.constant 0 : index
    %c0_16 = arith.constant 0 : index
    %24 = vector.load %arg6[%c0_15, %c0_16] : memref<64x256xbf16, #tpu.memory_space<vmem>>, vector<64x256xbf16>
    %cst_17 = arith.constant dense<0.000000e+00> : vector<8x256xf32>
    %25 = tpu.matmul %23, %24, %cst_17 {dimension_numbers = #tpu.dot_dimension_numbers<[1], [0], [0], [1], [0, 0, 1, 1], [], []>} : vector<8x64xbf16>, vector<64x256xbf16>, vector<8x256xf32> -> vector<8x256xf32>
    %26 = vector.extract_strided_slice %25 {offsets = [0, 0], sizes = [8, 128], strides = [1, 1]} : vector<8x256xf32> to vector<8x128xf32>
    %27 = vector.extract_strided_slice %21 {offsets = [0, 0], sizes = [8, 128], strides = [1, 1]} : vector<64x128xf32> to vector<8x128xf32>
    %28 = arith.addf %26, %27 : vector<8x128xf32>
    %29 = vector.extract_strided_slice %28 {offsets = [0, 0], sizes = [8, 96], strides = [1, 1]} : vector<8x128xf32> to vector<8x96xf32>
    %30 = arith.negf %29 : vector<8x96xf32>
    %31 = math.exp %30 : vector<8x96xf32>
    %cst_18 = arith.constant 1.000000e+00 : f32
    %32 = vector.broadcast %cst_18 : f32 to vector<8x96xf32>
    %33 = arith.addf %32, %31 : vector<8x96xf32>
    %34 = arith.divf %32, %33 : vector<8x96xf32>
    %35 = vector.extract_strided_slice %28 {offsets = [0, 96], sizes = [8, 32], strides = [1, 1]} : vector<8x128xf32> to vector<8x32xf32>
    %36 = math.tanh %35 : vector<8x32xf32>
    %37 = vector.extract_strided_slice %34 {offsets = [0, 0], sizes = [8, 32], strides = [1, 1]} : vector<8x96xf32> to vector<8x32xf32>
    %38 = vector.extract_strided_slice %34 {offsets = [0, 32], sizes = [8, 32], strides = [1, 1]} : vector<8x96xf32> to vector<8x32xf32>
    %39 = vector.extract_strided_slice %34 {offsets = [0, 64], sizes = [8, 32], strides = [1, 1]} : vector<8x96xf32> to vector<8x32xf32>
    %40 = arith.mulf %38, %14 : vector<8x32xf32>
    %41 = arith.mulf %37, %36 : vector<8x32xf32>
    %42 = arith.addf %40, %41 : vector<8x32xf32>
    %43 = math.tanh %42 : vector<8x32xf32>
    %44 = arith.mulf %39, %43 : vector<8x32xf32>
    %45 = tpu.concatenate %44, %13 in 1 : vector<8x32xf32>, vector<8x32xf32> -> vector<8x64xf32>
    %46 = arith.truncf %45 : vector<8x64xf32> to vector<8x64xbf16>
    %c0_19 = arith.constant 0 : index
    %c0_20 = arith.constant 0 : index
    %47 = vector.load %arg6[%c0_19, %c0_20] : memref<64x256xbf16, #tpu.memory_space<vmem>>, vector<64x256xbf16>
    %cst_21 = arith.constant dense<0.000000e+00> : vector<8x256xf32>
    %48 = tpu.matmul %46, %47, %cst_21 {dimension_numbers = #tpu.dot_dimension_numbers<[1], [0], [0], [1], [0, 0, 1, 1], [], []>} : vector<8x64xbf16>, vector<64x256xbf16>, vector<8x256xf32> -> vector<8x256xf32>
    %49 = vector.extract_strided_slice %48 {offsets = [0, 0], sizes = [8, 128], strides = [1, 1]} : vector<8x256xf32> to vector<8x128xf32>
    %50 = vector.extract_strided_slice %21 {offsets = [8, 0], sizes = [8, 128], strides = [1, 1]} : vector<64x128xf32> to vector<8x128xf32>
    %51 = arith.addf %49, %50 : vector<8x128xf32>
    %52 = vector.extract_strided_slice %51 {offsets = [0, 0], sizes = [8, 96], strides = [1, 1]} : vector<8x128xf32> to vector<8x96xf32>
    %53 = arith.negf %52 : vector<8x96xf32>
    %54 = math.exp %53 : vector<8x96xf32>
    %cst_22 = arith.constant 1.000000e+00 : f32
    %55 = vector.broadcast %cst_22 : f32 to vector<8x96xf32>
    %56 = arith.addf %55, %54 : vector<8x96xf32>
    %57 = arith.divf %55, %56 : vector<8x96xf32>
    %58 = vector.extract_strided_slice %51 {offsets = [0, 96], sizes = [8, 32], strides = [1, 1]} : vector<8x128xf32> to vector<8x32xf32>
    %59 = math.tanh %58 : vector<8x32xf32>
    %60 = vector.extract_strided_slice %57 {offsets = [0, 0], sizes = [8, 32], strides = [1, 1]} : vector<8x96xf32> to vector<8x32xf32>
    %61 = vector.extract_strided_slice %57 {offsets = [0, 32], sizes = [8, 32], strides = [1, 1]} : vector<8x96xf32> to vector<8x32xf32>
    %62 = vector.extract_strided_slice %57 {offsets = [0, 64], sizes = [8, 32], strides = [1, 1]} : vector<8x96xf32> to vector<8x32xf32>
    %63 = arith.mulf %61, %42 : vector<8x32xf32>
    %64 = arith.mulf %60, %59 : vector<8x32xf32>
    %65 = arith.addf %63, %64 : vector<8x32xf32>
    %66 = math.tanh %65 : vector<8x32xf32>
    %67 = arith.mulf %62, %66 : vector<8x32xf32>
    %68 = vector.extract_strided_slice %48 {offsets = [0, 128], sizes = [8, 128], strides = [1, 1]} : vector<8x256xf32> to vector<8x128xf32>
    %c0_23 = arith.constant 0 : index
    %c0_24 = arith.constant 0 : index
    %69 = vector.load %arg7[%c0_23, %c0_24] : memref<1x128xf32, #tpu.memory_space<vmem>>, vector<1x128xf32>
    %70 = vector.broadcast %69 : vector<1x128xf32> to vector<8x128xf32>
    %71 = arith.addf %68, %70 : vector<8x128xf32>
    %72 = vector.extract_strided_slice %71 {offsets = [0, 0], sizes = [8, 96], strides = [1, 1]} : vector<8x128xf32> to vector<8x96xf32>
    %73 = arith.negf %72 : vector<8x96xf32>
    %74 = math.exp %73 : vector<8x96xf32>
    %cst_25 = arith.constant 1.000000e+00 : f32
    %75 = vector.broadcast %cst_25 : f32 to vector<8x96xf32>
    %76 = arith.addf %75, %74 : vector<8x96xf32>
    %77 = arith.divf %75, %76 : vector<8x96xf32>
    %78 = vector.extract_strided_slice %71 {offsets = [0, 96], sizes = [8, 32], strides = [1, 1]} : vector<8x128xf32> to vector<8x32xf32>
    %79 = math.tanh %78 : vector<8x32xf32>
    %80 = vector.extract_strided_slice %77 {offsets = [0, 0], sizes = [8, 32], strides = [1, 1]} : vector<8x96xf32> to vector<8x32xf32>
    %81 = vector.extract_strided_slice %77 {offsets = [0, 32], sizes = [8, 32], strides = [1, 1]} : vector<8x96xf32> to vector<8x32xf32>
    %82 = vector.extract_strided_slice %77 {offsets = [0, 64], sizes = [8, 32], strides = [1, 1]} : vector<8x96xf32> to vector<8x32xf32>
    %83 = arith.mulf %81, %15 : vector<8x32xf32>
    %84 = arith.mulf %80, %79 : vector<8x32xf32>
    %85 = arith.addf %83, %84 : vector<8x32xf32>
    %86 = math.tanh %85 : vector<8x32xf32>
    %87 = arith.mulf %82, %86 : vector<8x32xf32>
    %c0_26 = arith.constant 0 : index
    %c0_27 = arith.constant 0 : index
    %88 = vector.load %arg11[%c0_26, %c0_27] : memref<8x256xf32, #tpu.memory_space<vmem>>, vector<8x32xf32>
    tpu.vector_store %arg11[%c0_26, %c0_27], %87 {strides = array<i32>} : memref<8x256xf32, #tpu.memory_space<vmem>>, vector<8x32xf32>,
    %89 = tpu.concatenate %67, %87 in 1 : vector<8x32xf32>, vector<8x32xf32> -> vector<8x64xf32>
    %90 = arith.truncf %89 : vector<8x64xf32> to vector<8x64xbf16>
    %c0_28 = arith.constant 0 : index
    %c0_29 = arith.constant 0 : index
    %91 = vector.load %arg6[%c0_28, %c0_29] : memref<64x256xbf16, #tpu.memory_space<vmem>>, vector<64x256xbf16>
    %cst_30 = arith.constant dense<0.000000e+00> : vector<8x256xf32>
    %92 = tpu.matmul %90, %91, %cst_30 {dimension_numbers = #tpu.dot_dimension_numbers<[1], [0], [0], [1], [0, 0, 1, 1], [], []>} : vector<8x64xbf16>, vector<64x256xbf16>, vector<8x256xf32> -> vector<8x256xf32>
    %93 = vector.extract_strided_slice %92 {offsets = [0, 0], sizes = [8, 128], strides = [1, 1]} : vector<8x256xf32> to vector<8x128xf32>
    %94 = vector.extract_strided_slice %21 {offsets = [16, 0], sizes = [8, 128], strides = [1, 1]} : vector<64x128xf32> to vector<8x128xf32>
    %95 = arith.addf %93, %94 : vector<8x128xf32>
    %96 = vector.extract_strided_slice %95 {offsets = [0, 0], sizes = [8, 96], strides = [1, 1]} : vector<8x128xf32> to vector<8x96xf32>
    %97 = arith.negf %96 : vector<8x96xf32>
    %98 = math.exp %97 : vector<8x96xf32>
    %cst_31 = arith.constant 1.000000e+00 : f32
    %99 = vector.broadcast %cst_31 : f32 to vector<8x96xf32>
    %100 = arith.addf %99, %98 : vector<8x96xf32>
    %101 = arith.divf %99, %100 : vector<8x96xf32>
    %102 = vector.extract_strided_slice %95 {offsets = [0, 96], sizes = [8, 32], strides = [1, 1]} : vector<8x128xf32> to vector<8x32xf32>
    %103 = math.tanh %102 : vector<8x32xf32>
    %104 = vector.extract_strided_slice %101 {offsets = [0, 0], sizes = [8, 32], strides = [1, 1]} : vector<8x96xf32> to vector<8x32xf32>
    %105 = vector.extract_strided_slice %101 {offsets = [0, 32], sizes = [8, 32], strides = [1, 1]} : vector<8x96xf32> to vector<8x32xf32>
    %106 = vector.extract_strided_slice %101 {offsets = [0, 64], sizes = [8, 32], strides = [1, 1]} : vector<8x96xf32> to vector<8x32xf32>
    %107 = arith.mulf %105, %65 : vector<8x32xf32>
    %108 = arith.mulf %104, %103 : vector<8x32xf32>
    %109 = arith.addf %107, %108 : vector<8x32xf32>
    %110 = math.tanh %109 : vector<8x32xf32>
    %111 = arith.mulf %106, %110 : vector<8x32xf32>
    %112 = vector.extract_strided_slice %92 {offsets = [0, 128], sizes = [8, 128], strides = [1, 1]} : vector<8x256xf32> to vector<8x128xf32>
    %c0_32 = arith.constant 0 : index
    %c0_33 = arith.constant 0 : index
    %113 = vector.load %arg7[%c0_32, %c0_33] : memref<1x128xf32, #tpu.memory_space<vmem>>, vector<1x128xf32>
    %114 = vector.broadcast %113 : vector<1x128xf32> to vector<8x128xf32>
    %115 = arith.addf %112, %114 : vector<8x128xf32>
    %116 = vector.extract_strided_slice %115 {offsets = [0, 0], sizes = [8, 96], strides = [1, 1]} : vector<8x128xf32> to vector<8x96xf32>
    %117 = arith.negf %116 : vector<8x96xf32>
    %118 = math.exp %117 : vector<8x96xf32>
    %cst_34 = arith.constant 1.000000e+00 : f32
    %119 = vector.broadcast %cst_34 : f32 to vector<8x96xf32>
    %120 = arith.addf %119, %118 : vector<8x96xf32>
    %121 = arith.divf %119, %120 : vector<8x96xf32>
    %122 = vector.extract_strided_slice %115 {offsets = [0, 96], sizes = [8, 32], strides = [1, 1]} : vector<8x128xf32> to vector<8x32xf32>
    %123 = math.tanh %122 : vector<8x32xf32>
    %124 = vector.extract_strided_slice %121 {offsets = [0, 0], sizes = [8, 32], strides = [1, 1]} : vector<8x96xf32> to vector<8x32xf32>
    %125 = vector.extract_strided_slice %121 {offsets = [0, 32], sizes = [8, 32], strides = [1, 1]} : vector<8x96xf32> to vector<8x32xf32>
    %126 = vector.extract_strided_slice %121 {offsets = [0, 64], sizes = [8, 32], strides = [1, 1]} : vector<8x96xf32> to vector<8x32xf32>
    %127 = arith.mulf %125, %85 : vector<8x32xf32>
    %128 = arith.mulf %124, %123 : vector<8x32xf32>
    %129 = arith.addf %127, %128 : vector<8x32xf32>
    %130 = math.tanh %129 : vector<8x32xf32>
    %131 = arith.mulf %126, %130 : vector<8x32xf32>
    %c0_35 = arith.constant 0 : index
    %c32 = arith.constant 32 : index
    %132 = vector.load %arg11[%c0_35, %c32] : memref<8x256xf32, #tpu.memory_space<vmem>>, vector<8x32xf32>
    tpu.vector_store %arg11[%c0_35, %c32], %131 {strides = array<i32>} : memref<8x256xf32, #tpu.memory_space<vmem>>, vector<8x32xf32>,
    %133 = tpu.concatenate %111, %131 in 1 : vector<8x32xf32>, vector<8x32xf32> -> vector<8x64xf32>
    %134 = arith.truncf %133 : vector<8x64xf32> to vector<8x64xbf16>
    %c0_36 = arith.constant 0 : index
    %c0_37 = arith.constant 0 : index
    %135 = vector.load %arg6[%c0_36, %c0_37] : memref<64x256xbf16, #tpu.memory_space<vmem>>, vector<64x256xbf16>
    %cst_38 = arith.constant dense<0.000000e+00> : vector<8x256xf32>
    %136 = tpu.matmul %134, %135, %cst_38 {dimension_numbers = #tpu.dot_dimension_numbers<[1], [0], [0], [1], [0, 0, 1, 1], [], []>} : vector<8x64xbf16>, vector<64x256xbf16>, vector<8x256xf32> -> vector<8x256xf32>
    %137 = vector.extract_strided_slice %136 {offsets = [0, 0], sizes = [8, 128], strides = [1, 1]} : vector<8x256xf32> to vector<8x128xf32>
    %138 = vector.extract_strided_slice %21 {offsets = [24, 0], sizes = [8, 128], strides = [1, 1]} : vector<64x128xf32> to vector<8x128xf32>
    %139 = arith.addf %137, %138 : vector<8x128xf32>
    %140 = vector.extract_strided_slice %139 {offsets = [0, 0], sizes = [8, 96], strides = [1, 1]} : vector<8x128xf32> to vector<8x96xf32>
    %141 = arith.negf %140 : vector<8x96xf32>
    %142 = math.exp %141 : vector<8x96xf32>
    %cst_39 = arith.constant 1.000000e+00 : f32
    %143 = vector.broadcast %cst_39 : f32 to vector<8x96xf32>
    %144 = arith.addf %143, %142 : vector<8x96xf32>
    %145 = arith.divf %143, %144 : vector<8x96xf32>
    %146 = vector.extract_strided_slice %139 {offsets = [0, 96], sizes = [8, 32], strides = [1, 1]} : vector<8x128xf32> to vector<8x32xf32>
    %147 = math.tanh %146 : vector<8x32xf32>
    %148 = vector.extract_strided_slice %145 {offsets = [0, 0], sizes = [8, 32], strides = [1, 1]} : vector<8x96xf32> to vector<8x32xf32>
    %149 = vector.extract_strided_slice %145 {offsets = [0, 32], sizes = [8, 32], strides = [1, 1]} : vector<8x96xf32> to vector<8x32xf32>
    %150 = vector.extract_strided_slice %145 {offsets = [0, 64], sizes = [8, 32], strides = [1, 1]} : vector<8x96xf32> to vector<8x32xf32>
    %151 = arith.mulf %149, %109 : vector<8x32xf32>
    %152 = arith.mulf %148, %147 : vector<8x32xf32>
    %153 = arith.addf %151, %152 : vector<8x32xf32>
    %154 = math.tanh %153 : vector<8x32xf32>
    %155 = arith.mulf %150, %154 : vector<8x32xf32>
    %156 = vector.extract_strided_slice %136 {offsets = [0, 128], sizes = [8, 128], strides = [1, 1]} : vector<8x256xf32> to vector<8x128xf32>
    %c0_40 = arith.constant 0 : index
    %c0_41 = arith.constant 0 : index
    %157 = vector.load %arg7[%c0_40, %c0_41] : memref<1x128xf32, #tpu.memory_space<vmem>>, vector<1x128xf32>
    %158 = vector.broadcast %157 : vector<1x128xf32> to vector<8x128xf32>
    %159 = arith.addf %156, %158 : vector<8x128xf32>
    %160 = vector.extract_strided_slice %159 {offsets = [0, 0], sizes = [8, 96], strides = [1, 1]} : vector<8x128xf32> to vector<8x96xf32>
    %161 = arith.negf %160 : vector<8x96xf32>
    %162 = math.exp %161 : vector<8x96xf32>
    %cst_42 = arith.constant 1.000000e+00 : f32
    %163 = vector.broadcast %cst_42 : f32 to vector<8x96xf32>
    %164 = arith.addf %163, %162 : vector<8x96xf32>
    %165 = arith.divf %163, %164 : vector<8x96xf32>
    %166 = vector.extract_strided_slice %159 {offsets = [0, 96], sizes = [8, 32], strides = [1, 1]} : vector<8x128xf32> to vector<8x32xf32>
    %167 = math.tanh %166 : vector<8x32xf32>
    %168 = vector.extract_strided_slice %165 {offsets = [0, 0], sizes = [8, 32], strides = [1, 1]} : vector<8x96xf32> to vector<8x32xf32>
    %169 = vector.extract_strided_slice %165 {offsets = [0, 32], sizes = [8, 32], strides = [1, 1]} : vector<8x96xf32> to vector<8x32xf32>
    %170 = vector.extract_strided_slice %165 {offsets = [0, 64], sizes = [8, 32], strides = [1, 1]} : vector<8x96xf32> to vector<8x32xf32>
    %171 = arith.mulf %169, %129 : vector<8x32xf32>
    %172 = arith.mulf %168, %167 : vector<8x32xf32>
    %173 = arith.addf %171, %172 : vector<8x32xf32>
    %174 = math.tanh %173 : vector<8x32xf32>
    %175 = arith.mulf %170, %174 : vector<8x32xf32>
    %c0_43 = arith.constant 0 : index
    %c64 = arith.constant 64 : index
    %176 = vector.load %arg11[%c0_43, %c64] : memref<8x256xf32, #tpu.memory_space<vmem>>, vector<8x32xf32>
    tpu.vector_store %arg11[%c0_43, %c64], %175 {strides = array<i32>} : memref<8x256xf32, #tpu.memory_space<vmem>>, vector<8x32xf32>,
    %177 = tpu.concatenate %155, %175 in 1 : vector<8x32xf32>, vector<8x32xf32> -> vector<8x64xf32>
    %178 = arith.truncf %177 : vector<8x64xf32> to vector<8x64xbf16>
    %c0_44 = arith.constant 0 : index
    %c0_45 = arith.constant 0 : index
    %179 = vector.load %arg6[%c0_44, %c0_45] : memref<64x256xbf16, #tpu.memory_space<vmem>>, vector<64x256xbf16>
    %cst_46 = arith.constant dense<0.000000e+00> : vector<8x256xf32>
    %180 = tpu.matmul %178, %179, %cst_46 {dimension_numbers = #tpu.dot_dimension_numbers<[1], [0], [0], [1], [0, 0, 1, 1], [], []>} : vector<8x64xbf16>, vector<64x256xbf16>, vector<8x256xf32> -> vector<8x256xf32>
    %181 = vector.extract_strided_slice %180 {offsets = [0, 0], sizes = [8, 128], strides = [1, 1]} : vector<8x256xf32> to vector<8x128xf32>
    %182 = vector.extract_strided_slice %21 {offsets = [32, 0], sizes = [8, 128], strides = [1, 1]} : vector<64x128xf32> to vector<8x128xf32>
    %183 = arith.addf %181, %182 : vector<8x128xf32>
    %184 = vector.extract_strided_slice %183 {offsets = [0, 0], sizes = [8, 96], strides = [1, 1]} : vector<8x128xf32> to vector<8x96xf32>
    %185 = arith.negf %184 : vector<8x96xf32>
    %186 = math.exp %185 : vector<8x96xf32>
    %cst_47 = arith.constant 1.000000e+00 : f32
    %187 = vector.broadcast %cst_47 : f32 to vector<8x96xf32>
    %188 = arith.addf %187, %186 : vector<8x96xf32>
    %189 = arith.divf %187, %188 : vector<8x96xf32>
    %190 = vector.extract_strided_slice %183 {offsets = [0, 96], sizes = [8, 32], strides = [1, 1]} : vector<8x128xf32> to vector<8x32xf32>
    %191 = math.tanh %190 : vector<8x32xf32>
    %192 = vector.extract_strided_slice %189 {offsets = [0, 0], sizes = [8, 32], strides = [1, 1]} : vector<8x96xf32> to vector<8x32xf32>
    %193 = vector.extract_strided_slice %189 {offsets = [0, 32], sizes = [8, 32], strides = [1, 1]} : vector<8x96xf32> to vector<8x32xf32>
    %194 = vector.extract_strided_slice %189 {offsets = [0, 64], sizes = [8, 32], strides = [1, 1]} : vector<8x96xf32> to vector<8x32xf32>
    %195 = arith.mulf %193, %153 : vector<8x32xf32>
    %196 = arith.mulf %192, %191 : vector<8x32xf32>
    %197 = arith.addf %195, %196 : vector<8x32xf32>
    %198 = math.tanh %197 : vector<8x32xf32>
    %199 = arith.mulf %194, %198 : vector<8x32xf32>
    %200 = vector.extract_strided_slice %180 {offsets = [0, 128], sizes = [8, 128], strides = [1, 1]} : vector<8x256xf32> to vector<8x128xf32>
    %c0_48 = arith.constant 0 : index
    %c0_49 = arith.constant 0 : index
    %201 = vector.load %arg7[%c0_48, %c0_49] : memref<1x128xf32, #tpu.memory_space<vmem>>, vector<1x128xf32>
    %202 = vector.broadcast %201 : vector<1x128xf32> to vector<8x128xf32>
    %203 = arith.addf %200, %202 : vector<8x128xf32>
    %204 = vector.extract_strided_slice %203 {offsets = [0, 0], sizes = [8, 96], strides = [1, 1]} : vector<8x128xf32> to vector<8x96xf32>
    %205 = arith.negf %204 : vector<8x96xf32>
    %206 = math.exp %205 : vector<8x96xf32>
    %cst_50 = arith.constant 1.000000e+00 : f32
    %207 = vector.broadcast %cst_50 : f32 to vector<8x96xf32>
    %208 = arith.addf %207, %206 : vector<8x96xf32>
    %209 = arith.divf %207, %208 : vector<8x96xf32>
    %210 = vector.extract_strided_slice %203 {offsets = [0, 96], sizes = [8, 32], strides = [1, 1]} : vector<8x128xf32> to vector<8x32xf32>
    %211 = math.tanh %210 : vector<8x32xf32>
    %212 = vector.extract_strided_slice %209 {offsets = [0, 0], sizes = [8, 32], strides = [1, 1]} : vector<8x96xf32> to vector<8x32xf32>
    %213 = vector.extract_strided_slice %209 {offsets = [0, 32], sizes = [8, 32], strides = [1, 1]} : vector<8x96xf32> to vector<8x32xf32>
    %214 = vector.extract_strided_slice %209 {offsets = [0, 64], sizes = [8, 32], strides = [1, 1]} : vector<8x96xf32> to vector<8x32xf32>
    %215 = arith.mulf %213, %173 : vector<8x32xf32>
    %216 = arith.mulf %212, %211 : vector<8x32xf32>
    %217 = arith.addf %215, %216 : vector<8x32xf32>
    %218 = math.tanh %217 : vector<8x32xf32>
    %219 = arith.mulf %214, %218 : vector<8x32xf32>
    %c0_51 = arith.constant 0 : index
    %c96 = arith.constant 96 : index
    %220 = vector.load %arg11[%c0_51, %c96] : memref<8x256xf32, #tpu.memory_space<vmem>>, vector<8x32xf32>
    tpu.vector_store %arg11[%c0_51, %c96], %219 {strides = array<i32>} : memref<8x256xf32, #tpu.memory_space<vmem>>, vector<8x32xf32>,
    %221 = tpu.concatenate %199, %219 in 1 : vector<8x32xf32>, vector<8x32xf32> -> vector<8x64xf32>
    %222 = arith.truncf %221 : vector<8x64xf32> to vector<8x64xbf16>
    %c0_52 = arith.constant 0 : index
    %c0_53 = arith.constant 0 : index
    %223 = vector.load %arg6[%c0_52, %c0_53] : memref<64x256xbf16, #tpu.memory_space<vmem>>, vector<64x256xbf16>
    %cst_54 = arith.constant dense<0.000000e+00> : vector<8x256xf32>
    %224 = tpu.matmul %222, %223, %cst_54 {dimension_numbers = #tpu.dot_dimension_numbers<[1], [0], [0], [1], [0, 0, 1, 1], [], []>} : vector<8x64xbf16>, vector<64x256xbf16>, vector<8x256xf32> -> vector<8x256xf32>
    %225 = vector.extract_strided_slice %224 {offsets = [0, 0], sizes = [8, 128], strides = [1, 1]} : vector<8x256xf32> to vector<8x128xf32>
    %226 = vector.extract_strided_slice %21 {offsets = [40, 0], sizes = [8, 128], strides = [1, 1]} : vector<64x128xf32> to vector<8x128xf32>
    %227 = arith.addf %225, %226 : vector<8x128xf32>
    %228 = vector.extract_strided_slice %227 {offsets = [0, 0], sizes = [8, 96], strides = [1, 1]} : vector<8x128xf32> to vector<8x96xf32>
    %229 = arith.negf %228 : vector<8x96xf32>
    %230 = math.exp %229 : vector<8x96xf32>
    %cst_55 = arith.constant 1.000000e+00 : f32
    %231 = vector.broadcast %cst_55 : f32 to vector<8x96xf32>
    %232 = arith.addf %231, %230 : vector<8x96xf32>
    %233 = arith.divf %231, %232 : vector<8x96xf32>
    %234 = vector.extract_strided_slice %227 {offsets = [0, 96], sizes = [8, 32], strides = [1, 1]} : vector<8x128xf32> to vector<8x32xf32>
    %235 = math.tanh %234 : vector<8x32xf32>
    %236 = vector.extract_strided_slice %233 {offsets = [0, 0], sizes = [8, 32], strides = [1, 1]} : vector<8x96xf32> to vector<8x32xf32>
    %237 = vector.extract_strided_slice %233 {offsets = [0, 32], sizes = [8, 32], strides = [1, 1]} : vector<8x96xf32> to vector<8x32xf32>
    %238 = vector.extract_strided_slice %233 {offsets = [0, 64], sizes = [8, 32], strides = [1, 1]} : vector<8x96xf32> to vector<8x32xf32>
    %239 = arith.mulf %237, %197 : vector<8x32xf32>
    %240 = arith.mulf %236, %235 : vector<8x32xf32>
    %241 = arith.addf %239, %240 : vector<8x32xf32>
    %242 = math.tanh %241 : vector<8x32xf32>
    %243 = arith.mulf %238, %242 : vector<8x32xf32>
    %244 = vector.extract_strided_slice %224 {offsets = [0, 128], sizes = [8, 128], strides = [1, 1]} : vector<8x256xf32> to vector<8x128xf32>
    %c0_56 = arith.constant 0 : index
    %c0_57 = arith.constant 0 : index
    %245 = vector.load %arg7[%c0_56, %c0_57] : memref<1x128xf32, #tpu.memory_space<vmem>>, vector<1x128xf32>
    %246 = vector.broadcast %245 : vector<1x128xf32> to vector<8x128xf32>
    %247 = arith.addf %244, %246 : vector<8x128xf32>
    %248 = vector.extract_strided_slice %247 {offsets = [0, 0], sizes = [8, 96], strides = [1, 1]} : vector<8x128xf32> to vector<8x96xf32>
    %249 = arith.negf %248 : vector<8x96xf32>
    %250 = math.exp %249 : vector<8x96xf32>
    %cst_58 = arith.constant 1.000000e+00 : f32
    %251 = vector.broadcast %cst_58 : f32 to vector<8x96xf32>
    %252 = arith.addf %251, %250 : vector<8x96xf32>
    %253 = arith.divf %251, %252 : vector<8x96xf32>
    %254 = vector.extract_strided_slice %247 {offsets = [0, 96], sizes = [8, 32], strides = [1, 1]} : vector<8x128xf32> to vector<8x32xf32>
    %255 = math.tanh %254 : vector<8x32xf32>
    %256 = vector.extract_strided_slice %253 {offsets = [0, 0], sizes = [8, 32], strides = [1, 1]} : vector<8x96xf32> to vector<8x32xf32>
    %257 = vector.extract_strided_slice %253 {offsets = [0, 32], sizes = [8, 32], strides = [1, 1]} : vector<8x96xf32> to vector<8x32xf32>
    %258 = vector.extract_strided_slice %253 {offsets = [0, 64], sizes = [8, 32], strides = [1, 1]} : vector<8x96xf32> to vector<8x32xf32>
    %259 = arith.mulf %257, %217 : vector<8x32xf32>
    %260 = arith.mulf %256, %255 : vector<8x32xf32>
    %261 = arith.addf %259, %260 : vector<8x32xf32>
    %262 = math.tanh %261 : vector<8x32xf32>
    %263 = arith.mulf %258, %262 : vector<8x32xf32>
    %c0_59 = arith.constant 0 : index
    %c128 = arith.constant 128 : index
    %264 = vector.load %arg11[%c0_59, %c128] : memref<8x256xf32, #tpu.memory_space<vmem>>, vector<8x32xf32>
    tpu.vector_store %arg11[%c0_59, %c128], %263 {strides = array<i32>} : memref<8x256xf32, #tpu.memory_space<vmem>>, vector<8x32xf32>,
    %265 = tpu.concatenate %243, %263 in 1 : vector<8x32xf32>, vector<8x32xf32> -> vector<8x64xf32>
    %266 = arith.truncf %265 : vector<8x64xf32> to vector<8x64xbf16>
    %c0_60 = arith.constant 0 : index
    %c0_61 = arith.constant 0 : index
    %267 = vector.load %arg6[%c0_60, %c0_61] : memref<64x256xbf16, #tpu.memory_space<vmem>>, vector<64x256xbf16>
    %cst_62 = arith.constant dense<0.000000e+00> : vector<8x256xf32>
    %268 = tpu.matmul %266, %267, %cst_62 {dimension_numbers = #tpu.dot_dimension_numbers<[1], [0], [0], [1], [0, 0, 1, 1], [], []>} : vector<8x64xbf16>, vector<64x256xbf16>, vector<8x256xf32> -> vector<8x256xf32>
    %269 = vector.extract_strided_slice %268 {offsets = [0, 0], sizes = [8, 128], strides = [1, 1]} : vector<8x256xf32> to vector<8x128xf32>
    %270 = vector.extract_strided_slice %21 {offsets = [48, 0], sizes = [8, 128], strides = [1, 1]} : vector<64x128xf32> to vector<8x128xf32>
    %271 = arith.addf %269, %270 : vector<8x128xf32>
    %272 = vector.extract_strided_slice %271 {offsets = [0, 0], sizes = [8, 96], strides = [1, 1]} : vector<8x128xf32> to vector<8x96xf32>
    %273 = arith.negf %272 : vector<8x96xf32>
    %274 = math.exp %273 : vector<8x96xf32>
    %cst_63 = arith.constant 1.000000e+00 : f32
    %275 = vector.broadcast %cst_63 : f32 to vector<8x96xf32>
    %276 = arith.addf %275, %274 : vector<8x96xf32>
    %277 = arith.divf %275, %276 : vector<8x96xf32>
    %278 = vector.extract_strided_slice %271 {offsets = [0, 96], sizes = [8, 32], strides = [1, 1]} : vector<8x128xf32> to vector<8x32xf32>
    %279 = math.tanh %278 : vector<8x32xf32>
    %280 = vector.extract_strided_slice %277 {offsets = [0, 0], sizes = [8, 32], strides = [1, 1]} : vector<8x96xf32> to vector<8x32xf32>
    %281 = vector.extract_strided_slice %277 {offsets = [0, 32], sizes = [8, 32], strides = [1, 1]} : vector<8x96xf32> to vector<8x32xf32>
    %282 = vector.extract_strided_slice %277 {offsets = [0, 64], sizes = [8, 32], strides = [1, 1]} : vector<8x96xf32> to vector<8x32xf32>
    %283 = arith.mulf %281, %241 : vector<8x32xf32>
    %284 = arith.mulf %280, %279 : vector<8x32xf32>
    %285 = arith.addf %283, %284 : vector<8x32xf32>
    %286 = math.tanh %285 : vector<8x32xf32>
    %287 = arith.mulf %282, %286 : vector<8x32xf32>
    %288 = vector.extract_strided_slice %268 {offsets = [0, 128], sizes = [8, 128], strides = [1, 1]} : vector<8x256xf32> to vector<8x128xf32>
    %c0_64 = arith.constant 0 : index
    %c0_65 = arith.constant 0 : index
    %289 = vector.load %arg7[%c0_64, %c0_65] : memref<1x128xf32, #tpu.memory_space<vmem>>, vector<1x128xf32>
    %290 = vector.broadcast %289 : vector<1x128xf32> to vector<8x128xf32>
    %291 = arith.addf %288, %290 : vector<8x128xf32>
    %292 = vector.extract_strided_slice %291 {offsets = [0, 0], sizes = [8, 96], strides = [1, 1]} : vector<8x128xf32> to vector<8x96xf32>
    %293 = arith.negf %292 : vector<8x96xf32>
    %294 = math.exp %293 : vector<8x96xf32>
    %cst_66 = arith.constant 1.000000e+00 : f32
    %295 = vector.broadcast %cst_66 : f32 to vector<8x96xf32>
    %296 = arith.addf %295, %294 : vector<8x96xf32>
    %297 = arith.divf %295, %296 : vector<8x96xf32>
    %298 = vector.extract_strided_slice %291 {offsets = [0, 96], sizes = [8, 32], strides = [1, 1]} : vector<8x128xf32> to vector<8x32xf32>
    %299 = math.tanh %298 : vector<8x32xf32>
    %300 = vector.extract_strided_slice %297 {offsets = [0, 0], sizes = [8, 32], strides = [1, 1]} : vector<8x96xf32> to vector<8x32xf32>
    %301 = vector.extract_strided_slice %297 {offsets = [0, 32], sizes = [8, 32], strides = [1, 1]} : vector<8x96xf32> to vector<8x32xf32>
    %302 = vector.extract_strided_slice %297 {offsets = [0, 64], sizes = [8, 32], strides = [1, 1]} : vector<8x96xf32> to vector<8x32xf32>
    %303 = arith.mulf %301, %261 : vector<8x32xf32>
    %304 = arith.mulf %300, %299 : vector<8x32xf32>
    %305 = arith.addf %303, %304 : vector<8x32xf32>
    %306 = math.tanh %305 : vector<8x32xf32>
    %307 = arith.mulf %302, %306 : vector<8x32xf32>
    %c0_67 = arith.constant 0 : index
    %c160 = arith.constant 160 : index
    %308 = vector.load %arg11[%c0_67, %c160] : memref<8x256xf32, #tpu.memory_space<vmem>>, vector<8x32xf32>
    tpu.vector_store %arg11[%c0_67, %c160], %307 {strides = array<i32>} : memref<8x256xf32, #tpu.memory_space<vmem>>, vector<8x32xf32>,
    %309 = tpu.concatenate %287, %307 in 1 : vector<8x32xf32>, vector<8x32xf32> -> vector<8x64xf32>
    %310 = arith.truncf %309 : vector<8x64xf32> to vector<8x64xbf16>
    %c0_68 = arith.constant 0 : index
    %c0_69 = arith.constant 0 : index
    %311 = vector.load %arg6[%c0_68, %c0_69] : memref<64x256xbf16, #tpu.memory_space<vmem>>, vector<64x256xbf16>
    %cst_70 = arith.constant dense<0.000000e+00> : vector<8x256xf32>
    %312 = tpu.matmul %310, %311, %cst_70 {dimension_numbers = #tpu.dot_dimension_numbers<[1], [0], [0], [1], [0, 0, 1, 1], [], []>} : vector<8x64xbf16>, vector<64x256xbf16>, vector<8x256xf32> -> vector<8x256xf32>
    %313 = vector.extract_strided_slice %312 {offsets = [0, 0], sizes = [8, 128], strides = [1, 1]} : vector<8x256xf32> to vector<8x128xf32>
    %314 = vector.extract_strided_slice %21 {offsets = [56, 0], sizes = [8, 128], strides = [1, 1]} : vector<64x128xf32> to vector<8x128xf32>
    %315 = arith.addf %313, %314 : vector<8x128xf32>
    %316 = vector.extract_strided_slice %315 {offsets = [0, 0], sizes = [8, 96], strides = [1, 1]} : vector<8x128xf32> to vector<8x96xf32>
    %317 = arith.negf %316 : vector<8x96xf32>
    %318 = math.exp %317 : vector<8x96xf32>
    %cst_71 = arith.constant 1.000000e+00 : f32
    %319 = vector.broadcast %cst_71 : f32 to vector<8x96xf32>
    %320 = arith.addf %319, %318 : vector<8x96xf32>
    %321 = arith.divf %319, %320 : vector<8x96xf32>
    %322 = vector.extract_strided_slice %315 {offsets = [0, 96], sizes = [8, 32], strides = [1, 1]} : vector<8x128xf32> to vector<8x32xf32>
    %323 = math.tanh %322 : vector<8x32xf32>
    %324 = vector.extract_strided_slice %321 {offsets = [0, 0], sizes = [8, 32], strides = [1, 1]} : vector<8x96xf32> to vector<8x32xf32>
    %325 = vector.extract_strided_slice %321 {offsets = [0, 32], sizes = [8, 32], strides = [1, 1]} : vector<8x96xf32> to vector<8x32xf32>
    %326 = vector.extract_strided_slice %321 {offsets = [0, 64], sizes = [8, 32], strides = [1, 1]} : vector<8x96xf32> to vector<8x32xf32>
    %327 = arith.mulf %325, %285 : vector<8x32xf32>
    %328 = arith.mulf %324, %323 : vector<8x32xf32>
    %329 = arith.addf %327, %328 : vector<8x32xf32>
    %330 = math.tanh %329 : vector<8x32xf32>
    %331 = arith.mulf %326, %330 : vector<8x32xf32>
    %332 = vector.extract_strided_slice %312 {offsets = [0, 128], sizes = [8, 128], strides = [1, 1]} : vector<8x256xf32> to vector<8x128xf32>
    %c0_72 = arith.constant 0 : index
    %c0_73 = arith.constant 0 : index
    %333 = vector.load %arg7[%c0_72, %c0_73] : memref<1x128xf32, #tpu.memory_space<vmem>>, vector<1x128xf32>
    %334 = vector.broadcast %333 : vector<1x128xf32> to vector<8x128xf32>
    %335 = arith.addf %332, %334 : vector<8x128xf32>
    %336 = vector.extract_strided_slice %335 {offsets = [0, 0], sizes = [8, 96], strides = [1, 1]} : vector<8x128xf32> to vector<8x96xf32>
    %337 = arith.negf %336 : vector<8x96xf32>
    %338 = math.exp %337 : vector<8x96xf32>
    %cst_74 = arith.constant 1.000000e+00 : f32
    %339 = vector.broadcast %cst_74 : f32 to vector<8x96xf32>
    %340 = arith.addf %339, %338 : vector<8x96xf32>
    %341 = arith.divf %339, %340 : vector<8x96xf32>
    %342 = vector.extract_strided_slice %335 {offsets = [0, 96], sizes = [8, 32], strides = [1, 1]} : vector<8x128xf32> to vector<8x32xf32>
    %343 = math.tanh %342 : vector<8x32xf32>
    %344 = vector.extract_strided_slice %341 {offsets = [0, 0], sizes = [8, 32], strides = [1, 1]} : vector<8x96xf32> to vector<8x32xf32>
    %345 = vector.extract_strided_slice %341 {offsets = [0, 32], sizes = [8, 32], strides = [1, 1]} : vector<8x96xf32> to vector<8x32xf32>
    %346 = vector.extract_strided_slice %341 {offsets = [0, 64], sizes = [8, 32], strides = [1, 1]} : vector<8x96xf32> to vector<8x32xf32>
    %347 = arith.mulf %345, %305 : vector<8x32xf32>
    %348 = arith.mulf %344, %343 : vector<8x32xf32>
    %349 = arith.addf %347, %348 : vector<8x32xf32>
    %350 = math.tanh %349 : vector<8x32xf32>
    %351 = arith.mulf %346, %350 : vector<8x32xf32>
    %c0_75 = arith.constant 0 : index
    %c192 = arith.constant 192 : index
    %352 = vector.load %arg11[%c0_75, %c192] : memref<8x256xf32, #tpu.memory_space<vmem>>, vector<8x32xf32>
    tpu.vector_store %arg11[%c0_75, %c192], %351 {strides = array<i32>} : memref<8x256xf32, #tpu.memory_space<vmem>>, vector<8x32xf32>,
    %353 = tpu.concatenate %331, %351 in 1 : vector<8x32xf32>, vector<8x32xf32> -> vector<8x64xf32>
    %354 = arith.truncf %353 : vector<8x64xf32> to vector<8x64xbf16>
    %c0_76 = arith.constant 0 : index
    %c0_77 = arith.constant 0 : index
    %355 = vector.load %arg6[%c0_76, %c0_77] : memref<64x256xbf16, #tpu.memory_space<vmem>>, vector<64x256xbf16>
    %cst_78 = arith.constant dense<0.000000e+00> : vector<8x256xf32>
    %356 = tpu.matmul %354, %355, %cst_78 {dimension_numbers = #tpu.dot_dimension_numbers<[1], [0], [0], [1], [0, 0, 1, 1], [], []>} : vector<8x64xbf16>, vector<64x256xbf16>, vector<8x256xf32> -> vector<8x256xf32>
    %357 = vector.extract_strided_slice %356 {offsets = [0, 128], sizes = [8, 128], strides = [1, 1]} : vector<8x256xf32> to vector<8x128xf32>
    %c0_79 = arith.constant 0 : index
    %c0_80 = arith.constant 0 : index
    %358 = vector.load %arg7[%c0_79, %c0_80] : memref<1x128xf32, #tpu.memory_space<vmem>>, vector<1x128xf32>
    %359 = vector.broadcast %358 : vector<1x128xf32> to vector<8x128xf32>
    %360 = arith.addf %357, %359 : vector<8x128xf32>
    %361 = vector.extract_strided_slice %360 {offsets = [0, 0], sizes = [8, 96], strides = [1, 1]} : vector<8x128xf32> to vector<8x96xf32>
    %362 = arith.negf %361 : vector<8x96xf32>
    %363 = math.exp %362 : vector<8x96xf32>
    %cst_81 = arith.constant 1.000000e+00 : f32
    %364 = vector.broadcast %cst_81 : f32 to vector<8x96xf32>
    %365 = arith.addf %364, %363 : vector<8x96xf32>
    %366 = arith.divf %364, %365 : vector<8x96xf32>
    %367 = vector.extract_strided_slice %360 {offsets = [0, 96], sizes = [8, 32], strides = [1, 1]} : vector<8x128xf32> to vector<8x32xf32>
    %368 = math.tanh %367 : vector<8x32xf32>
    %369 = vector.extract_strided_slice %366 {offsets = [0, 0], sizes = [8, 32], strides = [1, 1]} : vector<8x96xf32> to vector<8x32xf32>
    %370 = vector.extract_strided_slice %366 {offsets = [0, 32], sizes = [8, 32], strides = [1, 1]} : vector<8x96xf32> to vector<8x32xf32>
    %371 = vector.extract_strided_slice %366 {offsets = [0, 64], sizes = [8, 32], strides = [1, 1]} : vector<8x96xf32> to vector<8x32xf32>
    %372 = arith.mulf %370, %349 : vector<8x32xf32>
    %373 = arith.mulf %369, %368 : vector<8x32xf32>
    %374 = arith.addf %372, %373 : vector<8x32xf32>
    %375 = math.tanh %374 : vector<8x32xf32>
    %376 = arith.mulf %371, %375 : vector<8x32xf32>
    %c0_82 = arith.constant 0 : index
    %c224 = arith.constant 224 : index
    %377 = vector.load %arg11[%c0_82, %c224] : memref<8x256xf32, #tpu.memory_space<vmem>>, vector<8x32xf32>
    tpu.vector_store %arg11[%c0_82, %c224], %376 {strides = array<i32>} : memref<8x256xf32, #tpu.memory_space<vmem>>, vector<8x32xf32>,
    %c0_83 = arith.constant 0 : index
    %c0_84 = arith.constant 0 : index
    %378 = vector.load %arg11[%c0_83, %c0_84] : memref<8x256xf32, #tpu.memory_space<vmem>>, vector<8x256xf32>
    %379 = arith.truncf %378 : vector<8x256xf32> to vector<8x256xbf16>
    %c0_85 = arith.constant 0 : index
    %c0_86 = arith.constant 0 : index
    %380 = vector.load %arg8[%c0_85, %c0_86] : memref<256x8xbf16, #tpu.memory_space<vmem>>, vector<256x8xbf16>
    %cst_87 = arith.constant dense<0.000000e+00> : vector<8x8xf32>
    %381 = tpu.matmul %379, %380, %cst_87 {dimension_numbers = #tpu.dot_dimension_numbers<[1], [0], [0], [1], [0, 0, 1, 1], [], []>} : vector<8x256xbf16>, vector<256x8xbf16>, vector<8x8xf32> -> vector<8x8xf32>
    %c0_88 = arith.constant 0 : index
    %c0_89 = arith.constant 0 : index
    %382 = vector.load %arg9[%c0_88, %c0_89] : memref<1x8xf32, #tpu.memory_space<vmem>>, vector<1x8xf32>
    %383 = vector.broadcast %382 : vector<1x8xf32> to vector<8x8xf32>
    %384 = arith.addf %381, %383 : vector<8x8xf32>
    %385 = arith.negf %384 : vector<8x8xf32>
    %386 = math.exp %385 : vector<8x8xf32>
    %cst_90 = arith.constant 1.000000e+00 : f32
    %387 = vector.broadcast %cst_90 : f32 to vector<8x8xf32>
    %388 = arith.addf %387, %386 : vector<8x8xf32>
    %389 = arith.divf %387, %388 : vector<8x8xf32>
    %c0_91 = arith.constant 0 : index
    %c0_92 = arith.constant 0 : index
    %390 = vector.load %arg10[%c0_91, %c0_92] : memref<8x8xf32, #tpu.memory_space<vmem>>, vector<8x8xf32>
    tpu.vector_store %arg10[%c0_91, %c0_92], %389 {strides = array<i32>} : memref<8x8xf32, #tpu.memory_space<vmem>>, vector<8x8xf32>,
    return
  }
}

</mosaic_0001>

<llo_original>
// kernel: _lambda_.1
$region0: #{_lambda_.1}
  #allocation0 [shape = 'u32[]', space=smem, size = 0x4, offset = 0x4, fixed_abs, tag = 'smem constant byte address 0x4 - core index']
  #allocation1 [shape = 'u32[72,128]{1,0:T(1,128)}', space=vmem, size = 0x9000, scoped, tag = 'internal scratch']
  #allocation2 [shape = 'f32[8,256]{1,0:T(8,128)}', space=vmem, size = 0x2000, scoped, tag = 'scratch operand']
  %s0 = inlined_call_operand.vmem [shape: f32[8,1], index: 0, kind: input, shape index: {}]
  %s1 = inlined_call_operand.vmem [shape: bf16[64,4], index: 1, kind: input, shape index: {}]
  %s2 = inlined_call_operand.vmem [shape: f32[1,32], index: 2, kind: input, shape index: {}]
  %s3 = inlined_call_operand.vmem [shape: f32[1,32], index: 3, kind: input, shape index: {}]
  %s4 = inlined_call_operand.vmem [shape: bf16[4,128], index: 4, kind: input, shape index: {}]
  %s5 = inlined_call_operand.vmem [shape: f32[1,128], index: 5, kind: input, shape index: {}]
  %s6 = inlined_call_operand.vmem [shape: bf16[64,256], index: 6, kind: input, shape index: {}]
  %s7 = inlined_call_operand.vmem [shape: f32[1,128], index: 7, kind: input, shape index: {}]
  %s8 = inlined_call_operand.hbm [shape: bf16[256,8], index: 8, kind: input, shape index: {}]
  %s9 = inlined_call_operand.vmem [shape: f32[1,8], index: 9, kind: input, shape index: {}]
  %s10 = inlined_call_operand.vmem [shape: f32[8,8], index: 10, kind: output, shape index: {}]
  %s11 = sld [smem:[#allocation0]]
  $region54: #{_lambda_.1} parent=0
    _
  %s13 = ssub.s32 1, %s11
  %s14 = scalar_select 0, %s13, %s11
  $region1: #{_lambda_.1} parent=0
    #allocation3 [shape = 'u8[65536]{0}', space=vmem, size = 0x10000, scoped, tag = 'input window, operand 8, single buffered']
    #allocation4 [shape = 's32[1]{0}', space=sflag, size = 0x4, scoped, tag = 'scoped memory for _lambda_.1']
    %15 = vsyncpa [#allocation4], 0
    // Predicated region
    $region2: #{_lambda_.1} parent=1 // pred_check
      _
    $region3: #{_lambda_.1} parent=1 // pred_check_branch
      %17 = sbr.rel (0) target = $region5
    $region4: #{_lambda_.1} parent=1 // pred_region
      _
    $region5: #{_lambda_.1} parent=1 // pred_fallthru
      _
    // Predicated region
    $region6: #{_lambda_.1} parent=1 // pred_check
      _
    $region7: #{_lambda_.1} parent=1 // pred_check_branch
      %19 = sbr.rel (0) target = $region9
    $region8: #{_lambda_.1} parent=1 // pred_region
      _
    $region9: #{_lambda_.1} parent=1 // pred_fallthru
      _
    // Predicated region
    $region10: #{_lambda_.1} parent=1 // pred_check
      _
    $region11: #{_lambda_.1} parent=1 // pred_check_branch
      %21 = sbr.rel (0) target = $region13
    $region12: #{_lambda_.1} parent=1 // pred_region
      _
    $region13: #{_lambda_.1} parent=1 // pred_fallthru
      _
    // Predicated region
    $region14: #{_lambda_.1} parent=1 // pred_check
      _
    $region15: #{_lambda_.1} parent=1 // pred_check_branch
      %23 = sbr.rel (0) target = $region17
    $region16: #{_lambda_.1} parent=1 // pred_region
      _
    $region17: #{_lambda_.1} parent=1 // pred_fallthru
      _
    // Predicated region
    $region18: #{_lambda_.1} parent=1 // pred_check
      _
    $region19: #{_lambda_.1} parent=1 // pred_check_branch
      %25 = sbr.rel (0) target = $region21
    $region20: #{_lambda_.1} parent=1 // pred_region
      _
    $region21: #{_lambda_.1} parent=1 // pred_fallthru
      _
    // Predicated region
    $region22: #{_lambda_.1} parent=1 // pred_check
      _
    $region23: #{_lambda_.1} parent=1 // pred_check_branch
      %27 = sbr.rel (0) target = $region25
    $region24: #{_lambda_.1} parent=1 // pred_region
      _
    $region25: #{_lambda_.1} parent=1 // pred_fallthru
      _
    // Predicated region
    $region26: #{_lambda_.1} parent=1 // pred_check
      _
    $region27: #{_lambda_.1} parent=1 // pred_check_branch
      %29 = sbr.rel (0) target = $region29
    $region28: #{_lambda_.1} parent=1 // pred_region
      _
    $region29: #{_lambda_.1} parent=1 // pred_fallthru
      _
    // Predicated region
    $region30: #{_lambda_.1} parent=1 // pred_check
      _
    $region31: #{_lambda_.1} parent=1 // pred_check_branch
      %31 = sbr.rel (0) target = $region33
    $region32: #{_lambda_.1} parent=1 // pred_region
      _
    $region33: #{_lambda_.1} parent=1 // pred_fallthru
      _
    // Predicated region
    $region34: #{_lambda_.1} parent=1 // pred_check
      _
    $region35: #{_lambda_.1} parent=1 // pred_check_branch
      %33 = sbr.rel (0) target = $region37
    $region36: #{_lambda_.1} parent=1 // pred_region
      %35 = vsyncadd [#allocation4], 0
      %s36 = sshll.u32 %s8, 4
      %s37 = int_to_ptr.hbm [resolvable:$true] %s36
      %s38 = sshll.u32 [#allocation3], 4
      %s39 = int_to_ptr.vmem [resolvable:$true] %s38
      %44 = dma.hbm_to_vmem [thread:$0]  %s37, 2048, %s39, [#allocation4], 64, 64, 4
    $region37: #{_lambda_.1} parent=1 // pred_fallthru
      _
    // Predicated region
    $region38: #{_lambda_.1} parent=1 // pred_check
      _
    $region39: #{_lambda_.1} parent=1 // pred_check_branch
      %46 = sbr.rel (0) target = $region41
    $region40: #{_lambda_.1} parent=1 // pred_region
      _
    $region41: #{_lambda_.1} parent=1 // pred_fallthru
      _
    // Predicated region
    $region42: #{_lambda_.1} parent=1 // pred_check
      _
    $region43: #{_lambda_.1} parent=1 // pred_check_branch
      %48 = sbr.rel (0) target = $region45
    $region44: #{_lambda_.1} parent=1 // pred_region
      %50 = dma.done [#allocation4], 2048
    $region45: #{_lambda_.1} parent=1 // pred_fallthru
      _
    %v52 = vld [vmem:[%s0] sm:$0xff]
    %v53 = vld [vmem:[%s2] sm:$0x1]
    %55 = vset.pattern.permute.xlu0 0
    %56 = vperm.xlu0 %55, %v52
    %v57 = vpop.permute.xlu0 %56
    %v60 = vperm.slane %v53, 0
    %v62 = vmul.f32 %v57, %v60
    %v63 = vld [vmem:[%s3] sm:$0x1]
    %v65 = vperm.slane %v63, 0
    %v67 = vadd.f32 %v62, %v65
    %v68 = vxor.u32 %v67, 2147483648
    %v69 = vmul.f32 %v68, 1.442695
    %v70 = vpow.pop %v69
    %v71 = vadd.f32 %v70, 1.0
    %v72 = vrcp.pop %v71
    %v73 = vmul.f32 %v71, %v72
    %v74 = vsub.f32 1.0, %v73
    %v75 = vmul.f32 %v72, %v74
    %v76 = vadd.f32 %v72, %v75
    %vm77 = vweird.f32 %v71
    %vm78 = vweird.f32 %v72
    %vm79 = vmor %vm77, %vm78
    %v80 = vsel %vm79, %v72, %v76
    %v81 = vand.u32 2147483647, %v71
    %vm82 = vcmp.eq.f32.partialorder %v81, 8.507059e+37
    %v83 = vand.u32 %v71, 2147483648
    %v84 = vor.u32 1.1754944e-38, %v83
    %v85 = vsel %vm82, %v84, %v80
    %v86 = vmul.f32 1.0, %v85
    %v87 = vld [vmem:[%s1] sm:$0xf]
    %v88 = vld [vmem:[%s1 + $0x4] sm:$0xf]
    %v89 = vld [vmem:[%s1 + $0x8] sm:$0xf]
    %v90 = vld [vmem:[%s1 + $0xc] sm:$0xf]
    %v91 = vld [vmem:[%s1 + $0x10] sm:$0xf]
    %v92 = vld [vmem:[%s1 + $0x14] sm:$0xf]
    %v93 = vld [vmem:[%s1 + $0x18] sm:$0xf]
    %v94 = vld [vmem:[%s1 + $0x1c] sm:$0xf]
    %v95 = vld [vmem:[%s4] sm:$0x3]
    %v96 = vld [vmem:[%s5] sm:$0x1]
    %v98 = vperm.slane %v96, 0
    %v108 = vunpack.c.l.b16 %v87
    %v109 = vunpack.c.l.b16 %v88
    %v110 = vunpack.c.l.b16 %v89
    %v111 = vunpack.c.l.b16 %v90
    %v112 = vunpack.c.l.b16 %v91
    %v113 = vunpack.c.l.b16 %v92
    %v114 = vunpack.c.l.b16 %v93
    %v115 = vunpack.c.l.b16 %v94
    %v116 = vpack.c.b16 %v109, %v108
    %v117 = vpack.c.b16 %v111, %v110
    %v118 = vpack.c.b16 %v113, %v112
    %v119 = vpack.c.b16 %v115, %v114
    %vm120 = vcmask 31744
    %v122 = vsel %vm120, %v116, 0
    %v125 = vsel %vm120, %v117, 0
    %v128 = vsel %vm120, %v118, 0
    %v131 = vsel %vm120, %v119, 0
    %vm133 = vcmask 1041408
    %v135 = vsel %vm133, %v95, 0
    %137 = vmatpush.bf16.msra.mxu0 0
    %138 = vmatpush.bf16.msra.mxu0 0
    %139 = vmatpush.bf16.msra.mxu0 0
    %140 = vmatpush.bf16.msra.mxu0 0
    %141 = vmatpush.bf16.msra.mxu0 0
    %142 = vmatpush.bf16.msra.mxu0 0
    %143 = vmatpush.bf16.msra.mxu0 0
    %144 = vmatpush.bf16.msra.mxu0 %v135
    %145 = vmatmul.bf16.gmra.mxu0 %v122
    %v146 = vpop.f32.mrf.mxu0
    %v147 = vadd.f32 %v98, %v146
    %v148 = vpop.f32.mrf.mxu0
    %v149 = vadd.f32 %v98, %v148
    %150 = vmatmul.bf16.gmra.mxu0 %v125
    %v151 = vpop.f32.mrf.mxu0
    %v152 = vadd.f32 %v98, %v151
    %v153 = vpop.f32.mrf.mxu0
    %v154 = vadd.f32 %v98, %v153
    %155 = vmatmul.bf16.gmra.mxu0 %v128
    %v156 = vpop.f32.mrf.mxu0
    %v157 = vadd.f32 %v98, %v156
    %v158 = vpop.f32.mrf.mxu0
    %v159 = vadd.f32 %v98, %v158
    %160 = vmatmul.bf16.gmra.mxu0 %v131
    %v161 = vpop.f32.mrf.mxu0
    %v162 = vadd.f32 %v98, %v161
    %v163 = vpop.f32.mrf.mxu0
    %v164 = vadd.f32 %v98, %v163
    %165 = vdwg.mxu0
    %vm166 = vcmask 261120
    %v167 = vsel %vm166, %v86, 0.0
    %v168 = vpack.c.bf16 %v167, %v167
    %v169 = vld [vmem:[%s6] sm:$0xff]
    %v170 = vld [vmem:[%s6 + $0x8] sm:$0xff]
    %v171 = vld [vmem:[%s6 + $0x10] sm:$0xff]
    %v172 = vld [vmem:[%s6 + $0x18] sm:$0xff]
    %v173 = vld [vmem:[%s6 + $0x20] sm:$0xff]
    %v174 = vld [vmem:[%s6 + $0x28] sm:$0xff]
    %v175 = vld [vmem:[%s6 + $0x30] sm:$0xff]
    %v176 = vld [vmem:[%s6 + $0x38] sm:$0xff]
    %v185 = vunpack.c.l.b16 %v169
    %v186 = vunpack.c.l.b16 %v170
    %v187 = vunpack.c.l.b16 %v171
    %v188 = vunpack.c.l.b16 %v172
    %v189 = vunpack.c.l.b16 %v173
    %v190 = vunpack.c.l.b16 %v174
    %v191 = vunpack.c.l.b16 %v175
    %v192 = vunpack.c.l.b16 %v176
    %v193 = vpack.c.b16 %v186, %v185
    %v194 = vpack.c.b16 %v188, %v187
    %v195 = vpack.c.b16 %v190, %v189
    %v196 = vpack.c.b16 %v192, %v191
    %vm201 = vcmask 523264
    %v203 = vsel %vm201, %v168, 0
    %205 = vmatpush.bf16.msra.mxu0 0
    %206 = vmatpush.bf16.msra.mxu0 0
    %207 = vmatpush.bf16.msra.mxu0 0
    %208 = vmatpush.bf16.msra.mxu0 0
    %209 = vmatpush.bf16.msra.mxu0 %v196
    %210 = vmatpush.bf16.msra.mxu0 %v195
    %211 = vmatpush.bf16.msra.mxu0 %v194
    %212 = vmatpush.bf16.msra.mxu0 %v193
    %213 = vmatmul.bf16.gmra.mxu0 %v203
    %v214 = vpop.f32.mrf.mxu0
    %v215 = vadd.f32 0.0, %v214
    %v216 = vpop.f32.mrf.mxu0
    %217 = vdwg.mxu0
    %v218 = vadd.f32 %v215, %v147
    %v219 = vxor.u32 %v218, 2147483648
    %v220 = vmul.f32 %v219, 1.442695
    %v221 = vpow.pop %v220
    %v222 = vadd.f32 %v221, 1.0
    %v223 = vrcp.pop %v222
    %v224 = vmul.f32 %v222, %v223
    %v225 = vsub.f32 1.0, %v224
    %v226 = vmul.f32 %v223, %v225
    %v227 = vadd.f32 %v223, %v226
    %vm228 = vweird.f32 %v222
    %vm229 = vweird.f32 %v223
    %vm230 = vmor %vm228, %vm229
    %v231 = vsel %vm230, %v223, %v227
    %v232 = vand.u32 2147483647, %v222
    %vm233 = vcmp.eq.f32.partialorder %v232, 8.507059e+37
    %v234 = vand.u32 %v222, 2147483648
    %v235 = vor.u32 1.1754944e-38, %v234
    %v236 = vsel %vm233, %v235, %v231
    %v237 = vmul.f32 1.0, %v236
    %v238 = vtanh.pop %v218
    %v239 = vmul.f32 %v237, 0.0
    %241 = vrot.lane.b32.xlu0 %v238, 32
    %v242 = vpop.permute.xlu0 %241
    %v244 = vmul.f32 %v237, %v242
    %246 = vrot.lane.b32.xlu0 %v244, 32
    %v247 = vpop.permute.xlu0 %246
    %v249 = vadd.f32 %v239, %v247
    %v250 = vtanh.pop %v249
    %252 = vrot.lane.b32.xlu0 %v250, 32
    %v253 = vpop.permute.xlu0 %252
    %v255 = vmul.f32 %v237, %v253
    %257 = vrot.lane.b32.xlu0 %v255, 64
    %v258 = vpop.permute.xlu0 %257
    %v260 = vsel %vm166, %v258, 0.0
    %v261 = vpack.c.bf16 %v260, %v260
    %v262 = vunpack.c.h.b16 %v169
    %v263 = vunpack.c.h.b16 %v170
    %v264 = vunpack.c.h.b16 %v171
    %v265 = vunpack.c.h.b16 %v172
    %v266 = vunpack.c.h.b16 %v173
    %v267 = vunpack.c.h.b16 %v174
    %v268 = vunpack.c.h.b16 %v175
    %v269 = vunpack.c.h.b16 %v176
    %v270 = vpack.c.b16 %v263, %v262
    %v271 = vpack.c.b16 %v265, %v264
    %v272 = vpack.c.b16 %v267, %v266
    %v273 = vpack.c.b16 %v269, %v268
    %v279 = vsel %vm201, %v261, 0
    %281 = vmatpush.bf16.msra.mxu0 0
    %282 = vmatpush.bf16.msra.mxu0 0
    %283 = vmatpush.bf16.msra.mxu0 0
    %284 = vmatpush.bf16.msra.mxu0 0
    %285 = vmatpush.bf16.msra.mxu0 %v196
    %286 = vmatpush.bf16.msra.mxu0 %v195
    %287 = vmatpush.bf16.msra.mxu0 %v194
    %288 = vmatpush.bf16.msra.mxu0 %v193
    %289 = vmatmul.bf16.gmra.mxu0 %v279
    %v290 = vpop.f32.mrf.mxu0
    %v291 = vadd.f32 0.0, %v290
    %v292 = vpop.f32.mrf.mxu0
    %293 = vdwg.mxu0
    %294 = vmatpush.bf16.msra.mxu0 0
    %295 = vmatpush.bf16.msra.mxu0 0
    %296 = vmatpush.bf16.msra.mxu0 0
    %297 = vmatpush.bf16.msra.mxu0 0
    %298 = vmatpush.bf16.msra.mxu0 %v273
    %299 = vmatpush.bf16.msra.mxu0 %v272
    %300 = vmatpush.bf16.msra.mxu0 %v271
    %301 = vmatpush.bf16.msra.mxu0 %v270
    %302 = vmatmul.bf16.gmra.mxu0 %v279
    %v303 = vpop.f32.mrf.mxu0
    %v304 = vadd.f32 0.0, %v303
    %v305 = vpop.f32.mrf.mxu0
    %306 = vdwg.mxu0
    %v307 = vadd.f32 %v291, %v149
    %v308 = vxor.u32 %v307, 2147483648
    %v309 = vmul.f32 %v308, 1.442695
    %v310 = vpow.pop %v309
    %v311 = vadd.f32 %v310, 1.0
    %v312 = vrcp.pop %v311
    %v313 = vmul.f32 %v311, %v312
    %v314 = vsub.f32 1.0, %v313
    %v315 = vmul.f32 %v312, %v314
    %v316 = vadd.f32 %v312, %v315
    %vm317 = vweird.f32 %v311
    %vm318 = vweird.f32 %v312
    %vm319 = vmor %vm317, %vm318
    %v320 = vsel %vm319, %v312, %v316
    %v321 = vand.u32 2147483647, %v311
    %vm322 = vcmp.eq.f32.partialorder %v321, 8.507059e+37
    %v323 = vand.u32 %v311, 2147483648
    %v324 = vor.u32 1.1754944e-38, %v323
    %v325 = vsel %vm322, %v324, %v320
    %v326 = vmul.f32 1.0, %v325
    %v327 = vtanh.pop %v307
    %v328 = vmul.f32 %v326, %v249
    %330 = vrot.lane.b32.xlu0 %v327, 32
    %v331 = vpop.permute.xlu0 %330
    %v333 = vmul.f32 %v326, %v331
    %335 = vrot.lane.b32.xlu0 %v333, 32
    %v336 = vpop.permute.xlu0 %335
    %v338 = vadd.f32 %v328, %v336
    %v339 = vtanh.pop %v338
    %341 = vrot.lane.b32.xlu0 %v339, 32
    %v342 = vpop.permute.xlu0 %341
    %v344 = vmul.f32 %v326, %v342
    %v345 = vld [vmem:[%s7] sm:$0x1]
    %v347 = vperm.slane %v345, 0
    %v349 = vadd.f32 %v304, %v347
    %v350 = vxor.u32 %v349, 2147483648
    %v351 = vmul.f32 %v350, 1.442695
    %v352 = vpow.pop %v351
    %v353 = vadd.f32 %v352, 1.0
    %v354 = vrcp.pop %v353
    %v355 = vmul.f32 %v353, %v354
    %v356 = vsub.f32 1.0, %v355
    %v357 = vmul.f32 %v354, %v356
    %v358 = vadd.f32 %v354, %v357
    %vm359 = vweird.f32 %v353
    %vm360 = vweird.f32 %v354
    %vm361 = vmor %vm359, %vm360
    %v362 = vsel %vm361, %v354, %v358
    %v363 = vand.u32 2147483647, %v353
    %vm364 = vcmp.eq.f32.partialorder %v363, 8.507059e+37
    %v365 = vand.u32 %v353, 2147483648
    %v366 = vor.u32 1.1754944e-38, %v365
    %v367 = vsel %vm364, %v366, %v362
    %v368 = vmul.f32 1.0, %v367
    %v369 = vtanh.pop %v349
    %v370 = vmul.f32 %v368, 0.0
    %372 = vrot.lane.b32.xlu0 %v369, 32
    %v373 = vpop.permute.xlu0 %372
    %v375 = vmul.f32 %v368, %v373
    %377 = vrot.lane.b32.xlu0 %v375, 32
    %v378 = vpop.permute.xlu0 %377
    %v380 = vadd.f32 %v370, %v378
    %v381 = vtanh.pop %v380
    %383 = vrot.lane.b32.xlu0 %v381, 32
    %v384 = vpop.permute.xlu0 %383
    %v386 = vmul.f32 %v368, %v384
    %388 = vrot.lane.b32.xlu0 %v386, 64
    %v389 = vpop.permute.xlu0 %388
    %391 = vst.msk [vmem:[#allocation2] sm:$0xff] %vm166, %v389
    %393 = vrot.lane.b32.xlu0 %v344, 64
    %v394 = vpop.permute.xlu0 %393
    %396 = vrot.lane.b32.xlu0 %v386, 96
    %v397 = vpop.permute.xlu0 %396
    %v399 = vsel %vm166, %v394, %v397
    %v400 = vpack.c.bf16 %v399, %v399
    %v401 = vld [vmem:[%s6] sm:$0xff]
    %v402 = vld [vmem:[%s6 + $0x8] sm:$0xff]
    %v403 = vld [vmem:[%s6 + $0x10] sm:$0xff]
    %v404 = vld [vmem:[%s6 + $0x18] sm:$0xff]
    %v405 = vld [vmem:[%s6 + $0x20] sm:$0xff]
    %v406 = vld [vmem:[%s6 + $0x28] sm:$0xff]
    %v407 = vld [vmem:[%s6 + $0x30] sm:$0xff]
    %v408 = vld [vmem:[%s6 + $0x38] sm:$0xff]
    %v417 = vunpack.c.l.b16 %v401
    %v418 = vunpack.c.h.b16 %v401
    %v419 = vunpack.c.l.b16 %v402
    %v420 = vunpack.c.h.b16 %v402
    %v421 = vunpack.c.l.b16 %v403
    %v422 = vunpack.c.h.b16 %v403
    %v423 = vunpack.c.l.b16 %v404
    %v424 = vunpack.c.h.b16 %v404
    %v425 = vunpack.c.l.b16 %v405
    %v426 = vunpack.c.h.b16 %v405
    %v427 = vunpack.c.l.b16 %v406
    %v428 = vunpack.c.h.b16 %v406
    %v429 = vunpack.c.l.b16 %v407
    %v430 = vunpack.c.h.b16 %v407
    %v431 = vunpack.c.l.b16 %v408
    %v432 = vunpack.c.h.b16 %v408
    %v433 = vpack.c.b16 %v419, %v417
    %v434 = vpack.c.b16 %v420, %v418
    %v435 = vpack.c.b16 %v423, %v421
    %v436 = vpack.c.b16 %v424, %v422
    %v437 = vpack.c.b16 %v427, %v425
    %v438 = vpack.c.b16 %v428, %v426
    %v439 = vpack.c.b16 %v431, %v429
    %v440 = vpack.c.b16 %v432, %v430
    %v450 = vsel %vm201, %v400, 0
    %452 = vmatpush.bf16.msra.mxu0 0
    %453 = vmatpush.bf16.msra.mxu0 0
    %454 = vmatpush.bf16.msra.mxu0 0
    %455 = vmatpush.bf16.msra.mxu0 0
    %456 = vmatpush.bf16.msra.mxu0 %v439
    %457 = vmatpush.bf16.msra.mxu0 %v437
    %458 = vmatpush.bf16.msra.mxu0 %v435
    %459 = vmatpush.bf16.msra.mxu0 %v433
    %460 = vmatmul.bf16.gmra.mxu0 %v450
    %v461 = vpop.f32.mrf.mxu0
    %v462 = vadd.f32 0.0, %v461
    %v463 = vpop.f32.mrf.mxu0
    %464 = vdwg.mxu0
    %465 = vmatpush.bf16.msra.mxu0 0
    %466 = vmatpush.bf16.msra.mxu0 0
    %467 = vmatpush.bf16.msra.mxu0 0
    %468 = vmatpush.bf16.msra.mxu0 0
    %469 = vmatpush.bf16.msra.mxu0 %v440
    %470 = vmatpush.bf16.msra.mxu0 %v438
    %471 = vmatpush.bf16.msra.mxu0 %v436
    %472 = vmatpush.bf16.msra.mxu0 %v434
    %473 = vmatmul.bf16.gmra.mxu0 %v450
    %v474 = vpop.f32.mrf.mxu0
    %v475 = vadd.f32 0.0, %v474
    %v476 = vpop.f32.mrf.mxu0
    %477 = vdwg.mxu0
    %v478 = vadd.f32 %v462, %v152
    %v479 = vxor.u32 %v478, 2147483648
    %v480 = vmul.f32 %v479, 1.442695
    %v481 = vpow.pop %v480
    %v482 = vadd.f32 %v481, 1.0
    %v483 = vrcp.pop %v482
    %v484 = vmul.f32 %v482, %v483
    %v485 = vsub.f32 1.0, %v484
    %v486 = vmul.f32 %v483, %v485
    %v487 = vadd.f32 %v483, %v486
    %vm488 = vweird.f32 %v482
    %vm489 = vweird.f32 %v483
    %vm490 = vmor %vm488, %vm489
    %v491 = vsel %vm490, %v483, %v487
    %v492 = vand.u32 2147483647, %v482
    %vm493 = vcmp.eq.f32.partialorder %v492, 8.507059e+37
    %v494 = vand.u32 %v482, 2147483648
    %v495 = vor.u32 1.1754944e-38, %v494
    %v496 = vsel %vm493, %v495, %v491
    %v497 = vmul.f32 1.0, %v496
    %v498 = vtanh.pop %v478
    %v499 = vmul.f32 %v497, %v338
    %501 = vrot.lane.b32.xlu0 %v498, 32
    %v502 = vpop.permute.xlu0 %501
    %v504 = vmul.f32 %v497, %v502
    %506 = vrot.lane.b32.xlu0 %v504, 32
    %v507 = vpop.permute.xlu0 %506
    %v509 = vadd.f32 %v499, %v507
    %v510 = vtanh.pop %v509
    %512 = vrot.lane.b32.xlu0 %v510, 32
    %v513 = vpop.permute.xlu0 %512
    %v515 = vmul.f32 %v497, %v513
    %v516 = vld [vmem:[%s7] sm:$0x1]
    %v518 = vperm.slane %v516, 0
    %v520 = vadd.f32 %v475, %v518
    %v521 = vxor.u32 %v520, 2147483648
    %v522 = vmul.f32 %v521, 1.442695
    %v523 = vpow.pop %v522
    %v524 = vadd.f32 %v523, 1.0
    %v525 = vrcp.pop %v524
    %v526 = vmul.f32 %v524, %v525
    %v527 = vsub.f32 1.0, %v526
    %v528 = vmul.f32 %v525, %v527
    %v529 = vadd.f32 %v525, %v528
    %vm530 = vweird.f32 %v524
    %vm531 = vweird.f32 %v525
    %vm532 = vmor %vm530, %vm531
    %v533 = vsel %vm532, %v525, %v529
    %v534 = vand.u32 2147483647, %v524
    %vm535 = vcmp.eq.f32.partialorder %v534, 8.507059e+37
    %v536 = vand.u32 %v524, 2147483648
    %v537 = vor.u32 1.1754944e-38, %v536
    %v538 = vsel %vm535, %v537, %v533
    %v539 = vmul.f32 1.0, %v538
    %v540 = vtanh.pop %v520
    %v541 = vmul.f32 %v539, %v380
    %543 = vrot.lane.b32.xlu0 %v540, 32
    %v544 = vpop.permute.xlu0 %543
    %v546 = vmul.f32 %v539, %v544
    %548 = vrot.lane.b32.xlu0 %v546, 32
    %v549 = vpop.permute.xlu0 %548
    %v551 = vadd.f32 %v541, %v549
    %v552 = vtanh.pop %v551
    %554 = vrot.lane.b32.xlu0 %v552, 32
    %v555 = vpop.permute.xlu0 %554
    %v557 = vmul.f32 %v539, %v555
    %559 = vrot.lane.b32.xlu0 %v557, 96
    %v560 = vpop.permute.xlu0 %559
    %vm562 = vcmask 523520
    %563 = vst.msk [vmem:[#allocation2] sm:$0xff] %vm562, %v560
    %565 = vrot.lane.b32.xlu0 %v515, 64
    %v566 = vpop.permute.xlu0 %565
    %v568 = vsel %vm166, %v566, %v560
    %v569 = vpack.c.bf16 %v568, %v568
    %v570 = vld [vmem:[%s6] sm:$0xff]
    %v571 = vld [vmem:[%s6 + $0x8] sm:$0xff]
    %v572 = vld [vmem:[%s6 + $0x10] sm:$0xff]
    %v573 = vld [vmem:[%s6 + $0x18] sm:$0xff]
    %v574 = vld [vmem:[%s6 + $0x20] sm:$0xff]
    %v575 = vld [vmem:[%s6 + $0x28] sm:$0xff]
    %v576 = vld [vmem:[%s6 + $0x30] sm:$0xff]
    %v577 = vld [vmem:[%s6 + $0x38] sm:$0xff]
    %v586 = vunpack.c.l.b16 %v570
    %v587 = vunpack.c.h.b16 %v570
    %v588 = vunpack.c.l.b16 %v571
    %v589 = vunpack.c.h.b16 %v571
    %v590 = vunpack.c.l.b16 %v572
    %v591 = vunpack.c.h.b16 %v572
    %v592 = vunpack.c.l.b16 %v573
    %v593 = vunpack.c.h.b16 %v573
    %v594 = vunpack.c.l.b16 %v574
    %v595 = vunpack.c.h.b16 %v574
    %v596 = vunpack.c.l.b16 %v575
    %v597 = vunpack.c.h.b16 %v575
    %v598 = vunpack.c.l.b16 %v576
    %v599 = vunpack.c.h.b16 %v576
    %v600 = vunpack.c.l.b16 %v577
    %v601 = vunpack.c.h.b16 %v577
    %v602 = vpack.c.b16 %v588, %v586
    %v603 = vpack.c.b16 %v589, %v587
    %v604 = vpack.c.b16 %v592, %v590
    %v605 = vpack.c.b16 %v593, %v591
    %v606 = vpack.c.b16 %v596, %v594
    %v607 = vpack.c.b16 %v597, %v595
    %v608 = vpack.c.b16 %v600, %v598
    %v609 = vpack.c.b16 %v601, %v599
    %v619 = vsel %vm201, %v569, 0
    %621 = vmatpush.bf16.msra.mxu0 0
    %622 = vmatpush.bf16.msra.mxu0 0
    %623 = vmatpush.bf16.msra.mxu0 0
    %624 = vmatpush.bf16.msra.mxu0 0
    %625 = vmatpush.bf16.msra.mxu0 %v608
    %626 = vmatpush.bf16.msra.mxu0 %v606
    %627 = vmatpush.bf16.msra.mxu0 %v604
    %628 = vmatpush.bf16.msra.mxu0 %v602
    %629 = vmatmul.bf16.gmra.mxu0 %v619
    %v630 = vpop.f32.mrf.mxu0
    %v631 = vadd.f32 0.0, %v630
    %v632 = vpop.f32.mrf.mxu0
    %633 = vdwg.mxu0
    %634 = vmatpush.bf16.msra.mxu0 0
    %635 = vmatpush.bf16.msra.mxu0 0
    %636 = vmatpush.bf16.msra.mxu0 0
    %637 = vmatpush.bf16.msra.mxu0 0
    %638 = vmatpush.bf16.msra.mxu0 %v609
    %639 = vmatpush.bf16.msra.mxu0 %v607
    %640 = vmatpush.bf16.msra.mxu0 %v605
    %641 = vmatpush.bf16.msra.mxu0 %v603
    %642 = vmatmul.bf16.gmra.mxu0 %v619
    %v643 = vpop.f32.mrf.mxu0
    %v644 = vadd.f32 0.0, %v643
    %v645 = vpop.f32.mrf.mxu0
    %646 = vdwg.mxu0
    %v647 = vadd.f32 %v631, %v154
    %v648 = vxor.u32 %v647, 2147483648
    %v649 = vmul.f32 %v648, 1.442695
    %v650 = vpow.pop %v649
    %v651 = vadd.f32 %v650, 1.0
    %v652 = vrcp.pop %v651
    %v653 = vmul.f32 %v651, %v652
    %v654 = vsub.f32 1.0, %v653
    %v655 = vmul.f32 %v652, %v654
    %v656 = vadd.f32 %v652, %v655
    %vm657 = vweird.f32 %v651
    %vm658 = vweird.f32 %v652
    %vm659 = vmor %vm657, %vm658
    %v660 = vsel %vm659, %v652, %v656
    %v661 = vand.u32 2147483647, %v651
    %vm662 = vcmp.eq.f32.partialorder %v661, 8.507059e+37
    %v663 = vand.u32 %v651, 2147483648
    %v664 = vor.u32 1.1754944e-38, %v663
    %v665 = vsel %vm662, %v664, %v660
    %v666 = vmul.f32 1.0, %v665
    %v667 = vtanh.pop %v647
    %v668 = vmul.f32 %v666, %v509
    %670 = vrot.lane.b32.xlu0 %v667, 32
    %v671 = vpop.permute.xlu0 %670
    %v673 = vmul.f32 %v666, %v671
    %675 = vrot.lane.b32.xlu0 %v673, 32
    %v676 = vpop.permute.xlu0 %675
    %v678 = vadd.f32 %v668, %v676
    %v679 = vtanh.pop %v678
    %681 = vrot.lane.b32.xlu0 %v679, 32
    %v682 = vpop.permute.xlu0 %681
    %v684 = vmul.f32 %v666, %v682
    %v685 = vld [vmem:[%s7] sm:$0x1]
    %v687 = vperm.slane %v685, 0
    %v689 = vadd.f32 %v644, %v687
    %v690 = vxor.u32 %v689, 2147483648
    %v691 = vmul.f32 %v690, 1.442695
    %v692 = vpow.pop %v691
    %v693 = vadd.f32 %v692, 1.0
    %v694 = vrcp.pop %v693
    %v695 = vmul.f32 %v693, %v694
    %v696 = vsub.f32 1.0, %v695
    %v697 = vmul.f32 %v694, %v696
    %v698 = vadd.f32 %v694, %v697
    %vm699 = vweird.f32 %v693
    %vm700 = vweird.f32 %v694
    %vm701 = vmor %vm699, %vm700
    %v702 = vsel %vm701, %v694, %v698
    %v703 = vand.u32 2147483647, %v693
    %vm704 = vcmp.eq.f32.partialorder %v703, 8.507059e+37
    %v705 = vand.u32 %v693, 2147483648
    %v706 = vor.u32 1.1754944e-38, %v705
    %v707 = vsel %vm704, %v706, %v702
    %v708 = vmul.f32 1.0, %v707
    %v709 = vtanh.pop %v689
    %v710 = vmul.f32 %v708, %v551
    %712 = vrot.lane.b32.xlu0 %v709, 32
    %v713 = vpop.permute.xlu0 %712
    %v715 = vmul.f32 %v708, %v713
    %717 = vrot.lane.b32.xlu0 %v715, 32
    %v718 = vpop.permute.xlu0 %717
    %v720 = vadd.f32 %v710, %v718
    %v721 = vtanh.pop %v720
    %723 = vrot.lane.b32.xlu0 %v721, 32
    %v724 = vpop.permute.xlu0 %723
    %v726 = vmul.f32 %v708, %v724
    %vm727 = vcmask 785920
    %728 = vst.msk [vmem:[#allocation2] sm:$0xff] %vm727, %v726
    %730 = vrot.lane.b32.xlu0 %v684, 64
    %v731 = vpop.permute.xlu0 %730
    %734 = vrot.lane.b32.xlu0 %v726, 96
    %v735 = vpop.permute.xlu0 %734
    %v737 = vsel %vm166, %v731, %v735
    %v738 = vpack.c.bf16 %v737, %v737
    %v739 = vld [vmem:[%s6] sm:$0xff]
    %v740 = vld [vmem:[%s6 + $0x8] sm:$0xff]
    %v741 = vld [vmem:[%s6 + $0x10] sm:$0xff]
    %v742 = vld [vmem:[%s6 + $0x18] sm:$0xff]
    %v743 = vld [vmem:[%s6 + $0x20] sm:$0xff]
    %v744 = vld [vmem:[%s6 + $0x28] sm:$0xff]
    %v745 = vld [vmem:[%s6 + $0x30] sm:$0xff]
    %v746 = vld [vmem:[%s6 + $0x38] sm:$0xff]
    %v755 = vunpack.c.l.b16 %v739
    %v756 = vunpack.c.h.b16 %v739
    %v757 = vunpack.c.l.b16 %v740
    %v758 = vunpack.c.h.b16 %v740
    %v759 = vunpack.c.l.b16 %v741
    %v760 = vunpack.c.h.b16 %v741
    %v761 = vunpack.c.l.b16 %v742
    %v762 = vunpack.c.h.b16 %v742
    %v763 = vunpack.c.l.b16 %v743
    %v764 = vunpack.c.h.b16 %v743
    %v765 = vunpack.c.l.b16 %v744
    %v766 = vunpack.c.h.b16 %v744
    %v767 = vunpack.c.l.b16 %v745
    %v768 = vunpack.c.h.b16 %v745
    %v769 = vunpack.c.l.b16 %v746
    %v770 = vunpack.c.h.b16 %v746
    %v771 = vpack.c.b16 %v757, %v755
    %v772 = vpack.c.b16 %v758, %v756
    %v773 = vpack.c.b16 %v761, %v759
    %v774 = vpack.c.b16 %v762, %v760
    %v775 = vpack.c.b16 %v765, %v763
    %v776 = vpack.c.b16 %v766, %v764
    %v777 = vpack.c.b16 %v769, %v767
    %v778 = vpack.c.b16 %v770, %v768
    %v788 = vsel %vm201, %v738, 0
    %790 = vmatpush.bf16.msra.mxu0 0
    %791 = vmatpush.bf16.msra.mxu0 0
    %792 = vmatpush.bf16.msra.mxu0 0
    %793 = vmatpush.bf16.msra.mxu0 0
    %794 = vmatpush.bf16.msra.mxu0 %v777
    %795 = vmatpush.bf16.msra.mxu0 %v775
    %796 = vmatpush.bf16.msra.mxu0 %v773
    %797 = vmatpush.bf16.msra.mxu0 %v771
    %798 = vmatmul.bf16.gmra.mxu0 %v788
    %v799 = vpop.f32.mrf.mxu0
    %v800 = vadd.f32 0.0, %v799
    %v801 = vpop.f32.mrf.mxu0
    %802 = vdwg.mxu0
    %803 = vmatpush.bf16.msra.mxu0 0
    %804 = vmatpush.bf16.msra.mxu0 0
    %805 = vmatpush.bf16.msra.mxu0 0
    %806 = vmatpush.bf16.msra.mxu0 0
    %807 = vmatpush.bf16.msra.mxu0 %v778
    %808 = vmatpush.bf16.msra.mxu0 %v776
    %809 = vmatpush.bf16.msra.mxu0 %v774
    %810 = vmatpush.bf16.msra.mxu0 %v772
    %811 = vmatmul.bf16.gmra.mxu0 %v788
    %v812 = vpop.f32.mrf.mxu0
    %v813 = vadd.f32 0.0, %v812
    %v814 = vpop.f32.mrf.mxu0
    %815 = vdwg.mxu0
    %v816 = vadd.f32 %v800, %v157
    %v817 = vxor.u32 %v816, 2147483648
    %v818 = vmul.f32 %v817, 1.442695
    %v819 = vpow.pop %v818
    %v820 = vadd.f32 %v819, 1.0
    %v821 = vrcp.pop %v820
    %v822 = vmul.f32 %v820, %v821
    %v823 = vsub.f32 1.0, %v822
    %v824 = vmul.f32 %v821, %v823
    %v825 = vadd.f32 %v821, %v824
    %vm826 = vweird.f32 %v820
    %vm827 = vweird.f32 %v821
    %vm828 = vmor %vm826, %vm827
    %v829 = vsel %vm828, %v821, %v825
    %v830 = vand.u32 2147483647, %v820
    %vm831 = vcmp.eq.f32.partialorder %v830, 8.507059e+37
    %v832 = vand.u32 %v820, 2147483648
    %v833 = vor.u32 1.1754944e-38, %v832
    %v834 = vsel %vm831, %v833, %v829
    %v835 = vmul.f32 1.0, %v834
    %v836 = vtanh.pop %v816
    %v837 = vmul.f32 %v835, %v678
    %839 = vrot.lane.b32.xlu0 %v836, 32
    %v840 = vpop.permute.xlu0 %839
    %v842 = vmul.f32 %v835, %v840
    %844 = vrot.lane.b32.xlu0 %v842, 32
    %v845 = vpop.permute.xlu0 %844
    %v847 = vadd.f32 %v837, %v845
    %v848 = vtanh.pop %v847
    %850 = vrot.lane.b32.xlu0 %v848, 32
    %v851 = vpop.permute.xlu0 %850
    %v853 = vmul.f32 %v835, %v851
    %v854 = vld [vmem:[%s7] sm:$0x1]
    %v856 = vperm.slane %v854, 0
    %v858 = vadd.f32 %v813, %v856
    %v859 = vxor.u32 %v858, 2147483648
    %v860 = vmul.f32 %v859, 1.442695
    %v861 = vpow.pop %v860
    %v862 = vadd.f32 %v861, 1.0
    %v863 = vrcp.pop %v862
    %v864 = vmul.f32 %v862, %v863
    %v865 = vsub.f32 1.0, %v864
    %v866 = vmul.f32 %v863, %v865
    %v867 = vadd.f32 %v863, %v866
    %vm868 = vweird.f32 %v862
    %vm869 = vweird.f32 %v863
    %vm870 = vmor %vm868, %vm869
    %v871 = vsel %vm870, %v863, %v867
    %v872 = vand.u32 2147483647, %v862
    %vm873 = vcmp.eq.f32.partialorder %v872, 8.507059e+37
    %v874 = vand.u32 %v862, 2147483648
    %v875 = vor.u32 1.1754944e-38, %v874
    %v876 = vsel %vm873, %v875, %v871
    %v877 = vmul.f32 1.0, %v876
    %v878 = vtanh.pop %v858
    %v879 = vmul.f32 %v877, %v720
    %881 = vrot.lane.b32.xlu0 %v878, 32
    %v882 = vpop.permute.xlu0 %881
    %v884 = vmul.f32 %v877, %v882
    %886 = vrot.lane.b32.xlu0 %v884, 32
    %v887 = vpop.permute.xlu0 %886
    %v889 = vadd.f32 %v879, %v887
    %v890 = vtanh.pop %v889
    %892 = vrot.lane.b32.xlu0 %v890, 32
    %v893 = vpop.permute.xlu0 %892
    %v895 = vmul.f32 %v877, %v893
    %897 = vrot.lane.b32.xlu0 %v895, 32
    %v898 = vpop.permute.xlu0 %897
    %vm900 = vcmask 1048320
    %901 = vst.msk [vmem:[#allocation2] sm:$0xff] %vm900, %v898
    %903 = vrot.lane.b32.xlu0 %v853, 64
    %v904 = vpop.permute.xlu0 %903
    %906 = vrot.lane.b32.xlu0 %v895, 96
    %v907 = vpop.permute.xlu0 %906
    %v909 = vsel %vm166, %v904, %v907
    %v910 = vpack.c.bf16 %v909, %v909
    %v911 = vld [vmem:[%s6] sm:$0xff]
    %v912 = vld [vmem:[%s6 + $0x8] sm:$0xff]
    %v913 = vld [vmem:[%s6 + $0x10] sm:$0xff]
    %v914 = vld [vmem:[%s6 + $0x18] sm:$0xff]
    %v915 = vld [vmem:[%s6 + $0x20] sm:$0xff]
    %v916 = vld [vmem:[%s6 + $0x28] sm:$0xff]
    %v917 = vld [vmem:[%s6 + $0x30] sm:$0xff]
    %v918 = vld [vmem:[%s6 + $0x38] sm:$0xff]
    %v927 = vunpack.c.l.b16 %v911
    %v928 = vunpack.c.h.b16 %v911
    %v929 = vunpack.c.l.b16 %v912
    %v930 = vunpack.c.h.b16 %v912
    %v931 = vunpack.c.l.b16 %v913
    %v932 = vunpack.c.h.b16 %v913
    %v933 = vunpack.c.l.b16 %v914
    %v934 = vunpack.c.h.b16 %v914
    %v935 = vunpack.c.l.b16 %v915
    %v936 = vunpack.c.h.b16 %v915
    %v937 = vunpack.c.l.b16 %v916
    %v938 = vunpack.c.h.b16 %v916
    %v939 = vunpack.c.l.b16 %v917
    %v940 = vunpack.c.h.b16 %v917
    %v941 = vunpack.c.l.b16 %v918
    %v942 = vunpack.c.h.b16 %v918
    %v943 = vpack.c.b16 %v929, %v927
    %v944 = vpack.c.b16 %v930, %v928
    %v945 = vpack.c.b16 %v933, %v931
    %v946 = vpack.c.b16 %v934, %v932
    %v947 = vpack.c.b16 %v937, %v935
    %v948 = vpack.c.b16 %v938, %v936
    %v949 = vpack.c.b16 %v941, %v939
    %v950 = vpack.c.b16 %v942, %v940
    %v960 = vsel %vm201, %v910, 0
    %962 = vmatpush.bf16.msra.mxu0 0
    %963 = vmatpush.bf16.msra.mxu0 0
    %964 = vmatpush.bf16.msra.mxu0 0
    %965 = vmatpush.bf16.msra.mxu0 0
    %966 = vmatpush.bf16.msra.mxu0 %v949
    %967 = vmatpush.bf16.msra.mxu0 %v947
    %968 = vmatpush.bf16.msra.mxu0 %v945
    %969 = vmatpush.bf16.msra.mxu0 %v943
    %970 = vmatmul.bf16.gmra.mxu0 %v960
    %v971 = vpop.f32.mrf.mxu0
    %v972 = vadd.f32 0.0, %v971
    %v973 = vpop.f32.mrf.mxu0
    %974 = vdwg.mxu0
    %975 = vmatpush.bf16.msra.mxu0 0
    %976 = vmatpush.bf16.msra.mxu0 0
    %977 = vmatpush.bf16.msra.mxu0 0
    %978 = vmatpush.bf16.msra.mxu0 0
    %979 = vmatpush.bf16.msra.mxu0 %v950
    %980 = vmatpush.bf16.msra.mxu0 %v948
    %981 = vmatpush.bf16.msra.mxu0 %v946
    %982 = vmatpush.bf16.msra.mxu0 %v944
    %983 = vmatmul.bf16.gmra.mxu0 %v960
    %v984 = vpop.f32.mrf.mxu0
    %v985 = vadd.f32 0.0, %v984
    %v986 = vpop.f32.mrf.mxu0
    %987 = vdwg.mxu0
    %v988 = vadd.f32 %v972, %v159
    %v989 = vxor.u32 %v988, 2147483648
    %v990 = vmul.f32 %v989, 1.442695
    %v991 = vpow.pop %v990
    %v992 = vadd.f32 %v991, 1.0
    %v993 = vrcp.pop %v992
    %v994 = vmul.f32 %v992, %v993
    %v995 = vsub.f32 1.0, %v994
    %v996 = vmul.f32 %v993, %v995
    %v997 = vadd.f32 %v993, %v996
    %vm998 = vweird.f32 %v992
    %vm999 = vweird.f32 %v993
    %vm1000 = vmor %vm998, %vm999
    %v1001 = vsel %vm1000, %v993, %v997
    %v1002 = vand.u32 2147483647, %v992
    %vm1003 = vcmp.eq.f32.partialorder %v1002, 8.507059e+37
    %v1004 = vand.u32 %v992, 2147483648
    %v1005 = vor.u32 1.1754944e-38, %v1004
    %v1006 = vsel %vm1003, %v1005, %v1001
    %v1007 = vmul.f32 1.0, %v1006
    %v1008 = vtanh.pop %v988
    %v1009 = vmul.f32 %v1007, %v847
    %1011 = vrot.lane.b32.xlu0 %v1008, 32
    %v1012 = vpop.permute.xlu0 %1011
    %v1014 = vmul.f32 %v1007, %v1012
    %1016 = vrot.lane.b32.xlu0 %v1014, 32
    %v1017 = vpop.permute.xlu0 %1016
    %v1019 = vadd.f32 %v1009, %v1017
    %v1020 = vtanh.pop %v1019
    %1022 = vrot.lane.b32.xlu0 %v1020, 32
    %v1023 = vpop.permute.xlu0 %1022
    %v1025 = vmul.f32 %v1007, %v1023
    %v1026 = vld [vmem:[%s7] sm:$0x1]
    %v1028 = vperm.slane %v1026, 0
    %v1030 = vadd.f32 %v985, %v1028
    %v1031 = vxor.u32 %v1030, 2147483648
    %v1032 = vmul.f32 %v1031, 1.442695
    %v1033 = vpow.pop %v1032
    %v1034 = vadd.f32 %v1033, 1.0
    %v1035 = vrcp.pop %v1034
    %v1036 = vmul.f32 %v1034, %v1035
    %v1037 = vsub.f32 1.0, %v1036
    %v1038 = vmul.f32 %v1035, %v1037
    %v1039 = vadd.f32 %v1035, %v1038
    %vm1040 = vweird.f32 %v1034
    %vm1041 = vweird.f32 %v1035
    %vm1042 = vmor %vm1040, %vm1041
    %v1043 = vsel %vm1042, %v1035, %v1039
    %v1044 = vand.u32 2147483647, %v1034
    %vm1045 = vcmp.eq.f32.partialorder %v1044, 8.507059e+37
    %v1046 = vand.u32 %v1034, 2147483648
    %v1047 = vor.u32 1.1754944e-38, %v1046
    %v1048 = vsel %vm1045, %v1047, %v1043
    %v1049 = vmul.f32 1.0, %v1048
    %v1050 = vtanh.pop %v1030
    %v1051 = vmul.f32 %v1049, %v889
    %1053 = vrot.lane.b32.xlu0 %v1050, 32
    %v1054 = vpop.permute.xlu0 %1053
    %v1056 = vmul.f32 %v1049, %v1054
    %1058 = vrot.lane.b32.xlu0 %v1056, 32
    %v1059 = vpop.permute.xlu0 %1058
    %v1061 = vadd.f32 %v1051, %v1059
    %v1062 = vtanh.pop %v1061
    %1064 = vrot.lane.b32.xlu0 %v1062, 32
    %v1065 = vpop.permute.xlu0 %1064
    %v1067 = vmul.f32 %v1049, %v1065
    %1069 = vrot.lane.b32.xlu0 %v1067, 64
    %v1070 = vpop.permute.xlu0 %1069
    %1072 = vst.msk [vmem:[#allocation2 + $0x8] sm:$0xff] %vm166, %v1070
    %1074 = vrot.lane.b32.xlu0 %v1025, 64
    %v1075 = vpop.permute.xlu0 %1074
    %1077 = vrot.lane.b32.xlu0 %v1067, 96
    %v1078 = vpop.permute.xlu0 %1077
    %v1080 = vsel %vm166, %v1075, %v1078
    %v1081 = vpack.c.bf16 %v1080, %v1080
    %v1082 = vld [vmem:[%s6] sm:$0xff]
    %v1083 = vld [vmem:[%s6 + $0x8] sm:$0xff]
    %v1084 = vld [vmem:[%s6 + $0x10] sm:$0xff]
    %v1085 = vld [vmem:[%s6 + $0x18] sm:$0xff]
    %v1086 = vld [vmem:[%s6 + $0x20] sm:$0xff]
    %v1087 = vld [vmem:[%s6 + $0x28] sm:$0xff]
    %v1088 = vld [vmem:[%s6 + $0x30] sm:$0xff]
    %v1089 = vld [vmem:[%s6 + $0x38] sm:$0xff]
    %v1098 = vunpack.c.l.b16 %v1082
    %v1099 = vunpack.c.h.b16 %v1082
    %v1100 = vunpack.c.l.b16 %v1083
    %v1101 = vunpack.c.h.b16 %v1083
    %v1102 = vunpack.c.l.b16 %v1084
    %v1103 = vunpack.c.h.b16 %v1084
    %v1104 = vunpack.c.l.b16 %v1085
    %v1105 = vunpack.c.h.b16 %v1085
    %v1106 = vunpack.c.l.b16 %v1086
    %v1107 = vunpack.c.h.b16 %v1086
    %v1108 = vunpack.c.l.b16 %v1087
    %v1109 = vunpack.c.h.b16 %v1087
    %v1110 = vunpack.c.l.b16 %v1088
    %v1111 = vunpack.c.h.b16 %v1088
    %v1112 = vunpack.c.l.b16 %v1089
    %v1113 = vunpack.c.h.b16 %v1089
    %v1114 = vpack.c.b16 %v1100, %v1098
    %v1115 = vpack.c.b16 %v1101, %v1099
    %v1116 = vpack.c.b16 %v1104, %v1102
    %v1117 = vpack.c.b16 %v1105, %v1103
    %v1118 = vpack.c.b16 %v1108, %v1106
    %v1119 = vpack.c.b16 %v1109, %v1107
    %v1120 = vpack.c.b16 %v1112, %v1110
    %v1121 = vpack.c.b16 %v1113, %v1111
    %v1131 = vsel %vm201, %v1081, 0
    %1133 = vmatpush.bf16.msra.mxu0 0
    %1134 = vmatpush.bf16.msra.mxu0 0
    %1135 = vmatpush.bf16.msra.mxu0 0
    %1136 = vmatpush.bf16.msra.mxu0 0
    %1137 = vmatpush.bf16.msra.mxu0 %v1120
    %1138 = vmatpush.bf16.msra.mxu0 %v1118
    %1139 = vmatpush.bf16.msra.mxu0 %v1116
    %1140 = vmatpush.bf16.msra.mxu0 %v1114
    %1141 = vmatmul.bf16.gmra.mxu0 %v1131
    %v1142 = vpop.f32.mrf.mxu0
    %v1143 = vadd.f32 0.0, %v1142
    %v1144 = vpop.f32.mrf.mxu0
    %1145 = vdwg.mxu0
    %1146 = vmatpush.bf16.msra.mxu0 0
    %1147 = vmatpush.bf16.msra.mxu0 0
    %1148 = vmatpush.bf16.msra.mxu0 0
    %1149 = vmatpush.bf16.msra.mxu0 0
    %1150 = vmatpush.bf16.msra.mxu0 %v1121
    %1151 = vmatpush.bf16.msra.mxu0 %v1119
    %1152 = vmatpush.bf16.msra.mxu0 %v1117
    %1153 = vmatpush.bf16.msra.mxu0 %v1115
    %1154 = vmatmul.bf16.gmra.mxu0 %v1131
    %v1155 = vpop.f32.mrf.mxu0
    %v1156 = vadd.f32 0.0, %v1155
    %v1157 = vpop.f32.mrf.mxu0
    %1158 = vdwg.mxu0
    %v1159 = vadd.f32 %v1143, %v162
    %v1160 = vxor.u32 %v1159, 2147483648
    %v1161 = vmul.f32 %v1160, 1.442695
    %v1162 = vpow.pop %v1161
    %v1163 = vadd.f32 %v1162, 1.0
    %v1164 = vrcp.pop %v1163
    %v1165 = vmul.f32 %v1163, %v1164
    %v1166 = vsub.f32 1.0, %v1165
    %v1167 = vmul.f32 %v1164, %v1166
    %v1168 = vadd.f32 %v1164, %v1167
    %vm1169 = vweird.f32 %v1163
    %vm1170 = vweird.f32 %v1164
    %vm1171 = vmor %vm1169, %vm1170
    %v1172 = vsel %vm1171, %v1164, %v1168
    %v1173 = vand.u32 2147483647, %v1163
    %vm1174 = vcmp.eq.f32.partialorder %v1173, 8.507059e+37
    %v1175 = vand.u32 %v1163, 2147483648
    %v1176 = vor.u32 1.1754944e-38, %v1175
    %v1177 = vsel %vm1174, %v1176, %v1172
    %v1178 = vmul.f32 1.0, %v1177
    %v1179 = vtanh.pop %v1159
    %v1180 = vmul.f32 %v1178, %v1019
    %1182 = vrot.lane.b32.xlu0 %v1179, 32
    %v1183 = vpop.permute.xlu0 %1182
    %v1185 = vmul.f32 %v1178, %v1183
    %1187 = vrot.lane.b32.xlu0 %v1185, 32
    %v1188 = vpop.permute.xlu0 %1187
    %v1190 = vadd.f32 %v1180, %v1188
    %v1191 = vtanh.pop %v1190
    %1193 = vrot.lane.b32.xlu0 %v1191, 32
    %v1194 = vpop.permute.xlu0 %1193
    %v1196 = vmul.f32 %v1178, %v1194
    %v1197 = vld [vmem:[%s7] sm:$0x1]
    %v1199 = vperm.slane %v1197, 0
    %v1201 = vadd.f32 %v1156, %v1199
    %v1202 = vxor.u32 %v1201, 2147483648
    %v1203 = vmul.f32 %v1202, 1.442695
    %v1204 = vpow.pop %v1203
    %v1205 = vadd.f32 %v1204, 1.0
    %v1206 = vrcp.pop %v1205
    %v1207 = vmul.f32 %v1205, %v1206
    %v1208 = vsub.f32 1.0, %v1207
    %v1209 = vmul.f32 %v1206, %v1208
    %v1210 = vadd.f32 %v1206, %v1209
    %vm1211 = vweird.f32 %v1205
    %vm1212 = vweird.f32 %v1206
    %vm1213 = vmor %vm1211, %vm1212
    %v1214 = vsel %vm1213, %v1206, %v1210
    %v1215 = vand.u32 2147483647, %v1205
    %vm1216 = vcmp.eq.f32.partialorder %v1215, 8.507059e+37
    %v1217 = vand.u32 %v1205, 2147483648
    %v1218 = vor.u32 1.1754944e-38, %v1217
    %v1219 = vsel %vm1216, %v1218, %v1214
    %v1220 = vmul.f32 1.0, %v1219
    %v1221 = vtanh.pop %v1201
    %v1222 = vmul.f32 %v1220, %v1061
    %1224 = vrot.lane.b32.xlu0 %v1221, 32
    %v1225 = vpop.permute.xlu0 %1224
    %v1227 = vmul.f32 %v1220, %v1225
    %1229 = vrot.lane.b32.xlu0 %v1227, 32
    %v1230 = vpop.permute.xlu0 %1229
    %v1232 = vadd.f32 %v1222, %v1230
    %v1233 = vtanh.pop %v1232
    %1235 = vrot.lane.b32.xlu0 %v1233, 32
    %v1236 = vpop.permute.xlu0 %1235
    %v1238 = vmul.f32 %v1220, %v1236
    %1240 = vrot.lane.b32.xlu0 %v1238, 96
    %v1241 = vpop.permute.xlu0 %1240
    %1243 = vst.msk [vmem:[#allocation2 + $0x8] sm:$0xff] %vm562, %v1241
    %1245 = vrot.lane.b32.xlu0 %v1196, 64
    %v1246 = vpop.permute.xlu0 %1245
    %v1248 = vsel %vm166, %v1246, %v1241
    %v1249 = vpack.c.bf16 %v1248, %v1248
    %v1250 = vld [vmem:[%s6] sm:$0xff]
    %v1251 = vld [vmem:[%s6 + $0x8] sm:$0xff]
    %v1252 = vld [vmem:[%s6 + $0x10] sm:$0xff]
    %v1253 = vld [vmem:[%s6 + $0x18] sm:$0xff]
    %v1254 = vld [vmem:[%s6 + $0x20] sm:$0xff]
    %v1255 = vld [vmem:[%s6 + $0x28] sm:$0xff]
    %v1256 = vld [vmem:[%s6 + $0x30] sm:$0xff]
    %v1257 = vld [vmem:[%s6 + $0x38] sm:$0xff]
    %v1266 = vunpack.c.l.b16 %v1250
    %v1267 = vunpack.c.h.b16 %v1250
    %v1268 = vunpack.c.l.b16 %v1251
    %v1269 = vunpack.c.h.b16 %v1251
    %v1270 = vunpack.c.l.b16 %v1252
    %v1271 = vunpack.c.h.b16 %v1252
    %v1272 = vunpack.c.l.b16 %v1253
    %v1273 = vunpack.c.h.b16 %v1253
    %v1274 = vunpack.c.l.b16 %v1254
    %v1275 = vunpack.c.h.b16 %v1254
    %v1276 = vunpack.c.l.b16 %v1255
    %v1277 = vunpack.c.h.b16 %v1255
    %v1278 = vunpack.c.l.b16 %v1256
    %v1279 = vunpack.c.h.b16 %v1256
    %v1280 = vunpack.c.l.b16 %v1257
    %v1281 = vunpack.c.h.b16 %v1257
    %v1282 = vpack.c.b16 %v1268, %v1266
    %v1283 = vpack.c.b16 %v1269, %v1267
    %v1284 = vpack.c.b16 %v1272, %v1270
    %v1285 = vpack.c.b16 %v1273, %v1271
    %v1286 = vpack.c.b16 %v1276, %v1274
    %v1287 = vpack.c.b16 %v1277, %v1275
    %v1288 = vpack.c.b16 %v1280, %v1278
    %v1289 = vpack.c.b16 %v1281, %v1279
    %v1299 = vsel %vm201, %v1249, 0
    %1301 = vmatpush.bf16.msra.mxu0 0
    %1302 = vmatpush.bf16.msra.mxu0 0
    %1303 = vmatpush.bf16.msra.mxu0 0
    %1304 = vmatpush.bf16.msra.mxu0 0
    %1305 = vmatpush.bf16.msra.mxu0 %v1288
    %1306 = vmatpush.bf16.msra.mxu0 %v1286
    %1307 = vmatpush.bf16.msra.mxu0 %v1284
    %1308 = vmatpush.bf16.msra.mxu0 %v1282
    %1309 = vmatmul.bf16.gmra.mxu0 %v1299
    %v1310 = vpop.f32.mrf.mxu0
    %v1311 = vadd.f32 0.0, %v1310
    %v1312 = vpop.f32.mrf.mxu0
    %1313 = vdwg.mxu0
    %1314 = vmatpush.bf16.msra.mxu0 0
    %1315 = vmatpush.bf16.msra.mxu0 0
    %1316 = vmatpush.bf16.msra.mxu0 0
    %1317 = vmatpush.bf16.msra.mxu0 0
    %1318 = vmatpush.bf16.msra.mxu0 %v1289
    %1319 = vmatpush.bf16.msra.mxu0 %v1287
    %1320 = vmatpush.bf16.msra.mxu0 %v1285
    %1321 = vmatpush.bf16.msra.mxu0 %v1283
    %1322 = vmatmul.bf16.gmra.mxu0 %v1299
    %v1323 = vpop.f32.mrf.mxu0
    %v1324 = vadd.f32 0.0, %v1323
    %v1325 = vpop.f32.mrf.mxu0
    %1326 = vdwg.mxu0
    %v1327 = vadd.f32 %v1311, %v164
    %v1328 = vxor.u32 %v1327, 2147483648
    %v1329 = vmul.f32 %v1328, 1.442695
    %v1330 = vpow.pop %v1329
    %v1331 = vadd.f32 %v1330, 1.0
    %v1332 = vrcp.pop %v1331
    %v1333 = vmul.f32 %v1331, %v1332
    %v1334 = vsub.f32 1.0, %v1333
    %v1335 = vmul.f32 %v1332, %v1334
    %v1336 = vadd.f32 %v1332, %v1335
    %vm1337 = vweird.f32 %v1331
    %vm1338 = vweird.f32 %v1332
    %vm1339 = vmor %vm1337, %vm1338
    %v1340 = vsel %vm1339, %v1332, %v1336
    %v1341 = vand.u32 2147483647, %v1331
    %vm1342 = vcmp.eq.f32.partialorder %v1341, 8.507059e+37
    %v1343 = vand.u32 %v1331, 2147483648
    %v1344 = vor.u32 1.1754944e-38, %v1343
    %v1345 = vsel %vm1342, %v1344, %v1340
    %v1346 = vmul.f32 1.0, %v1345
    %v1347 = vtanh.pop %v1327
    %v1348 = vmul.f32 %v1346, %v1190
    %1350 = vrot.lane.b32.xlu0 %v1347, 32
    %v1351 = vpop.permute.xlu0 %1350
    %v1353 = vmul.f32 %v1346, %v1351
    %1355 = vrot.lane.b32.xlu0 %v1353, 32
    %v1356 = vpop.permute.xlu0 %1355
    %v1358 = vadd.f32 %v1348, %v1356
    %v1359 = vtanh.pop %v1358
    %1361 = vrot.lane.b32.xlu0 %v1359, 32
    %v1362 = vpop.permute.xlu0 %1361
    %v1364 = vmul.f32 %v1346, %v1362
    %v1365 = vld [vmem:[%s7] sm:$0x1]
    %v1367 = vperm.slane %v1365, 0
    %v1369 = vadd.f32 %v1324, %v1367
    %v1370 = vxor.u32 %v1369, 2147483648
    %v1371 = vmul.f32 %v1370, 1.442695
    %v1372 = vpow.pop %v1371
    %v1373 = vadd.f32 %v1372, 1.0
    %v1374 = vrcp.pop %v1373
    %v1375 = vmul.f32 %v1373, %v1374
    %v1376 = vsub.f32 1.0, %v1375
    %v1377 = vmul.f32 %v1374, %v1376
    %v1378 = vadd.f32 %v1374, %v1377
    %vm1379 = vweird.f32 %v1373
    %vm1380 = vweird.f32 %v1374
    %vm1381 = vmor %vm1379, %vm1380
    %v1382 = vsel %vm1381, %v1374, %v1378
    %v1383 = vand.u32 2147483647, %v1373
    %vm1384 = vcmp.eq.f32.partialorder %v1383, 8.507059e+37
    %v1385 = vand.u32 %v1373, 2147483648
    %v1386 = vor.u32 1.1754944e-38, %v1385
    %v1387 = vsel %vm1384, %v1386, %v1382
    %v1388 = vmul.f32 1.0, %v1387
    %v1389 = vtanh.pop %v1369
    %v1390 = vmul.f32 %v1388, %v1232
    %1392 = vrot.lane.b32.xlu0 %v1389, 32
    %v1393 = vpop.permute.xlu0 %1392
    %v1395 = vmul.f32 %v1388, %v1393
    %1397 = vrot.lane.b32.xlu0 %v1395, 32
    %v1398 = vpop.permute.xlu0 %1397
    %v1400 = vadd.f32 %v1390, %v1398
    %v1401 = vtanh.pop %v1400
    %1403 = vrot.lane.b32.xlu0 %v1401, 32
    %v1404 = vpop.permute.xlu0 %1403
    %v1406 = vmul.f32 %v1388, %v1404
    %1407 = vst.msk [vmem:[#allocation2 + $0x8] sm:$0xff] %vm727, %v1406
    %1409 = vrot.lane.b32.xlu0 %v1364, 64
    %v1410 = vpop.permute.xlu0 %1409
    %1413 = vrot.lane.b32.xlu0 %v1406, 96
    %v1414 = vpop.permute.xlu0 %1413
    %v1416 = vsel %vm166, %v1410, %v1414
    %v1417 = vpack.c.bf16 %v1416, %v1416
    %v1418 = vld [vmem:[%s6] sm:$0xff]
    %v1419 = vld [vmem:[%s6 + $0x8] sm:$0xff]
    %v1420 = vld [vmem:[%s6 + $0x10] sm:$0xff]
    %v1421 = vld [vmem:[%s6 + $0x18] sm:$0xff]
    %v1422 = vld [vmem:[%s6 + $0x20] sm:$0xff]
    %v1423 = vld [vmem:[%s6 + $0x28] sm:$0xff]
    %v1424 = vld [vmem:[%s6 + $0x30] sm:$0xff]
    %v1425 = vld [vmem:[%s6 + $0x38] sm:$0xff]
    %v1434 = vunpack.c.h.b16 %v1418
    %v1435 = vunpack.c.h.b16 %v1419
    %v1436 = vunpack.c.h.b16 %v1420
    %v1437 = vunpack.c.h.b16 %v1421
    %v1438 = vunpack.c.h.b16 %v1422
    %v1439 = vunpack.c.h.b16 %v1423
    %v1440 = vunpack.c.h.b16 %v1424
    %v1441 = vunpack.c.h.b16 %v1425
    %v1442 = vpack.c.b16 %v1435, %v1434
    %v1443 = vpack.c.b16 %v1437, %v1436
    %v1444 = vpack.c.b16 %v1439, %v1438
    %v1445 = vpack.c.b16 %v1441, %v1440
    %v1451 = vsel %vm201, %v1417, 0
    %1453 = vmatpush.bf16.msra.mxu0 0
    %1454 = vmatpush.bf16.msra.mxu0 0
    %1455 = vmatpush.bf16.msra.mxu0 0
    %1456 = vmatpush.bf16.msra.mxu0 0
    %1457 = vmatpush.bf16.msra.mxu0 %v1445
    %1458 = vmatpush.bf16.msra.mxu0 %v1444
    %1459 = vmatpush.bf16.msra.mxu0 %v1443
    %1460 = vmatpush.bf16.msra.mxu0 %v1442
    %1461 = vmatmul.bf16.gmra.mxu0 %v1451
    %v1462 = vpop.f32.mrf.mxu0
    %v1463 = vadd.f32 0.0, %v1462
    %v1464 = vpop.f32.mrf.mxu0
    %1465 = vdwg.mxu0
    %v1466 = vld [vmem:[%s7] sm:$0x1]
    %v1468 = vperm.slane %v1466, 0
    %v1470 = vadd.f32 %v1463, %v1468
    %v1471 = vxor.u32 %v1470, 2147483648
    %v1472 = vmul.f32 %v1471, 1.442695
    %v1473 = vpow.pop %v1472
    %v1474 = vadd.f32 %v1473, 1.0
    %v1475 = vrcp.pop %v1474
    %v1476 = vmul.f32 %v1474, %v1475
    %v1477 = vsub.f32 1.0, %v1476
    %v1478 = vmul.f32 %v1475, %v1477
    %v1479 = vadd.f32 %v1475, %v1478
    %vm1480 = vweird.f32 %v1474
    %vm1481 = vweird.f32 %v1475
    %vm1482 = vmor %vm1480, %vm1481
    %v1483 = vsel %vm1482, %v1475, %v1479
    %v1484 = vand.u32 2147483647, %v1474
    %vm1485 = vcmp.eq.f32.partialorder %v1484, 8.507059e+37
    %v1486 = vand.u32 %v1474, 2147483648
    %v1487 = vor.u32 1.1754944e-38, %v1486
    %v1488 = vsel %vm1485, %v1487, %v1483
    %v1489 = vmul.f32 1.0, %v1488
    %v1490 = vtanh.pop %v1470
    %v1491 = vmul.f32 %v1489, %v1400
    %1493 = vrot.lane.b32.xlu0 %v1490, 32
    %v1494 = vpop.permute.xlu0 %1493
    %v1496 = vmul.f32 %v1489, %v1494
    %1498 = vrot.lane.b32.xlu0 %v1496, 32
    %v1499 = vpop.permute.xlu0 %1498
    %v1501 = vadd.f32 %v1491, %v1499
    %v1502 = vtanh.pop %v1501
    %1504 = vrot.lane.b32.xlu0 %v1502, 32
    %v1505 = vpop.permute.xlu0 %1504
    %v1507 = vmul.f32 %v1489, %v1505
    %1509 = vrot.lane.b32.xlu0 %v1507, 32
    %v1510 = vpop.permute.xlu0 %1509
    %1512 = vst.msk [vmem:[#allocation2 + $0x8] sm:$0xff] %vm900, %v1510
    %v1513 = vld [vmem:[#allocation2] sm:$0xff]
    %v1514 = vld [vmem:[#allocation2 + $0x8] sm:$0xff]
    %v1515 = vpack.c.bf16 %v1513, %v1513
    %v1516 = vpack.c.bf16 %v1514, %v1514
    %v1517 = vld [vmem:[#allocation3] sm:$0xf]
    %v1518 = vld [vmem:[#allocation3 + $0x4] sm:$0xf]
    %v1519 = vld [vmem:[#allocation3 + $0x8] sm:$0xf]
    %v1520 = vld [vmem:[#allocation3 + $0xc] sm:$0xf]
    %v1521 = vld [vmem:[#allocation3 + $0x10] sm:$0xf]
    %v1522 = vld [vmem:[#allocation3 + $0x14] sm:$0xf]
    %v1523 = vld [vmem:[#allocation3 + $0x18] sm:$0xf]
    %v1524 = vld [vmem:[#allocation3 + $0x1c] sm:$0xf]
    %v1525 = vld [vmem:[#allocation3 + $0x20] sm:$0xf]
    %v1526 = vld [vmem:[#allocation3 + $0x24] sm:$0xf]
    %v1527 = vld [vmem:[#allocation3 + $0x28] sm:$0xf]
    %v1528 = vld [vmem:[#allocation3 + $0x2c] sm:$0xf]
    %v1529 = vld [vmem:[#allocation3 + $0x30] sm:$0xf]
    %v1530 = vld [vmem:[#allocation3 + $0x34] sm:$0xf]
    %v1531 = vld [vmem:[#allocation3 + $0x38] sm:$0xf]
    %v1532 = vld [vmem:[#allocation3 + $0x3c] sm:$0xf]
    %v1533 = vld [vmem:[#allocation3 + $0x40] sm:$0xf]
    %v1534 = vld [vmem:[#allocation3 + $0x44] sm:$0xf]
    %v1535 = vld [vmem:[#allocation3 + $0x48] sm:$0xf]
    %v1536 = vld [vmem:[#allocation3 + $0x4c] sm:$0xf]
    %v1537 = vld [vmem:[#allocation3 + $0x50] sm:$0xf]
    %v1538 = vld [vmem:[#allocation3 + $0x54] sm:$0xf]
    %v1539 = vld [vmem:[#allocation3 + $0x58] sm:$0xf]
    %v1540 = vld [vmem:[#allocation3 + $0x5c] sm:$0xf]
    %v1541 = vld [vmem:[#allocation3 + $0x60] sm:$0xf]
    %v1542 = vld [vmem:[#allocation3 + $0x64] sm:$0xf]
    %v1543 = vld [vmem:[#allocation3 + $0x68] sm:$0xf]
    %v1544 = vld [vmem:[#allocation3 + $0x6c] sm:$0xf]
    %v1545 = vld [vmem:[#allocation3 + $0x70] sm:$0xf]
    %v1546 = vld [vmem:[#allocation3 + $0x74] sm:$0xf]
    %v1547 = vld [vmem:[#allocation3 + $0x78] sm:$0xf]
    %v1548 = vld [vmem:[#allocation3 + $0x7c] sm:$0xf]
    %v1549 = vld [vmem:[%s9] sm:$0x1]
    %v1551 = vperm.slane %v1549, 0
    %v1585 = vunpack.c.l.b16 %v1517
    %v1586 = vunpack.c.l.b16 %v1518
    %v1587 = vunpack.c.l.b16 %v1519
    %v1588 = vunpack.c.l.b16 %v1520
    %v1589 = vunpack.c.l.b16 %v1521
    %v1590 = vunpack.c.l.b16 %v1522
    %v1591 = vunpack.c.l.b16 %v1523
    %v1592 = vunpack.c.l.b16 %v1524
    %v1593 = vunpack.c.l.b16 %v1525
    %v1594 = vunpack.c.l.b16 %v1526
    %v1595 = vunpack.c.l.b16 %v1527
    %v1596 = vunpack.c.l.b16 %v1528
    %v1597 = vunpack.c.l.b16 %v1529
    %v1598 = vunpack.c.l.b16 %v1530
    %v1599 = vunpack.c.l.b16 %v1531
    %v1600 = vunpack.c.l.b16 %v1532
    %v1601 = vunpack.c.l.b16 %v1533
    %v1602 = vunpack.c.l.b16 %v1534
    %v1603 = vunpack.c.l.b16 %v1535
    %v1604 = vunpack.c.l.b16 %v1536
    %v1605 = vunpack.c.l.b16 %v1537
    %v1606 = vunpack.c.l.b16 %v1538
    %v1607 = vunpack.c.l.b16 %v1539
    %v1608 = vunpack.c.l.b16 %v1540
    %v1609 = vunpack.c.l.b16 %v1541
    %v1610 = vunpack.c.l.b16 %v1542
    %v1611 = vunpack.c.l.b16 %v1543
    %v1612 = vunpack.c.l.b16 %v1544
    %v1613 = vunpack.c.l.b16 %v1545
    %v1614 = vunpack.c.l.b16 %v1546
    %v1615 = vunpack.c.l.b16 %v1547
    %v1616 = vunpack.c.l.b16 %v1548
    %v1617 = vpack.c.b16 %v1586, %v1585
    %v1618 = vpack.c.b16 %v1588, %v1587
    %v1619 = vpack.c.b16 %v1590, %v1589
    %v1620 = vpack.c.b16 %v1592, %v1591
    %v1621 = vpack.c.b16 %v1594, %v1593
    %v1622 = vpack.c.b16 %v1596, %v1595
    %v1623 = vpack.c.b16 %v1598, %v1597
    %v1624 = vpack.c.b16 %v1600, %v1599
    %v1625 = vpack.c.b16 %v1602, %v1601
    %v1626 = vpack.c.b16 %v1604, %v1603
    %v1627 = vpack.c.b16 %v1606, %v1605
    %v1628 = vpack.c.b16 %v1608, %v1607
    %v1629 = vpack.c.b16 %v1610, %v1609
    %v1630 = vpack.c.b16 %v1612, %v1611
    %v1631 = vpack.c.b16 %v1614, %v1613
    %v1632 = vpack.c.b16 %v1616, %v1615
    %1649 = vmatpush.bf16.msra.mxu0 %v1624
    %1650 = vmatpush.bf16.msra.mxu0 %v1623
    %1651 = vmatpush.bf16.msra.mxu0 %v1622
    %1652 = vmatpush.bf16.msra.mxu0 %v1621
    %1653 = vmatpush.bf16.msra.mxu0 %v1620
    %1654 = vmatpush.bf16.msra.mxu0 %v1619
    %1655 = vmatpush.bf16.msra.mxu0 %v1618
    %1656 = vmatpush.bf16.msra.mxu0 %v1617
    %1657 = vmatmul.bf16.gmra.mxu0 %v1515
    %v1658 = vpop.f32.mrf.mxu0
    %v1659 = vadd.f32 %v1551, %v1658
    %v1660 = vpop.f32.mrf.mxu0
    %1661 = vdwg.mxu0
    %1662 = vmatpush.bf16.msra.mxu0 %v1632
    %1663 = vmatpush.bf16.msra.mxu0 %v1631
    %1664 = vmatpush.bf16.msra.mxu0 %v1630
    %1665 = vmatpush.bf16.msra.mxu0 %v1629
    %1666 = vmatpush.bf16.msra.mxu0 %v1628
    %1667 = vmatpush.bf16.msra.mxu0 %v1627
    %1668 = vmatpush.bf16.msra.mxu0 %v1626
    %1669 = vmatpush.bf16.msra.mxu0 %v1625
    %1670 = vmatmul.bf16.gmra.mxu0 %v1516
    %v1671 = vpop.f32.mrf.mxu0
    %v1672 = vadd.f32 %v1659, %v1671
    %v1673 = vpop.f32.mrf.mxu0
    %1674 = vdwg.mxu0
    %v1675 = vxor.u32 %v1672, 2147483648
    %v1676 = vmul.f32 %v1675, 1.442695
    %v1677 = vpow.pop %v1676
    %v1678 = vadd.f32 %v1677, 1.0
    %v1679 = vrcp.pop %v1678
    %v1680 = vmul.f32 %v1678, %v1679
    %v1681 = vsub.f32 1.0, %v1680
    %v1682 = vmul.f32 %v1679, %v1681
    %v1683 = vadd.f32 %v1679, %v1682
    %vm1684 = vweird.f32 %v1678
    %vm1685 = vweird.f32 %v1679
    %vm1686 = vmor %vm1684, %vm1685
    %v1687 = vsel %vm1686, %v1679, %v1683
    %v1688 = vand.u32 2147483647, %v1678
    %vm1689 = vcmp.eq.f32.partialorder %v1688, 8.507059e+37
    %v1690 = vand.u32 %v1678, 2147483648
    %v1691 = vor.u32 1.1754944e-38, %v1690
    %v1692 = vsel %vm1689, %v1691, %v1687
    %v1693 = vmul.f32 1.0, %v1692
    %vm1694 = vcmask 64512
    %1695 = vst.msk [vmem:[%s10] sm:$0xff] %vm1694, %v1693
    // Predicated region
    $region46: #{_lambda_.1} parent=1 // pred_check
      _
    $region47: #{_lambda_.1} parent=1 // pred_check_branch
      %1697 = sbr.rel (0) target = $region49
    $region48: #{_lambda_.1} parent=1 // pred_region
      _
    $region49: #{_lambda_.1} parent=1 // pred_fallthru
      _
    // Predicated region
    $region50: #{_lambda_.1} parent=1 // pred_check
      _
    $region51: #{_lambda_.1} parent=1 // pred_check_branch
      %1699 = sbr.rel (0) target = $region53
    $region52: #{_lambda_.1} parent=1 // pred_region
      _
    $region53: #{_lambda_.1} parent=1 // pred_fallthru
      _
    %1700 = vsyncpa [#allocation4], 1

</llo_original>
